<compile_context>
chip_gen: v7x
topology: tpu7x:2x2x1
jax: 0.10.0
libtpu: 0.0.40
codegen_flags: <defaults>
</compile_context>

<pallas_src>
import jax
import jax.numpy as jnp
from jax.experimental import pallas as pl
from jax.experimental.pallas import tpu as pltpu


def make_dnn_kernel(num_layers, use_scale, compute_dtype):
    """Kernel body. Ref order: [task_scale?], x, (W1, b1), ..., (WL, bL), out."""

    def kernel(*refs):
        idx = 0
        if use_scale:
            scale = refs[idx][...]              # [TB, 1] f32
            idx += 1
        x_ref = refs[idx]
        idx += 1
        layer_refs = refs[idx: idx + 2 * num_layers]
        out_ref = refs[idx + 2 * num_layers]

        h = x_ref[...].astype(compute_dtype)    # [TB, D_in] matmul operand
        for l in range(num_layers):
            w = layer_refs[2 * l][...]          # [D_l, D_{l+1}] (host pre-cast)
            b = layer_refs[2 * l + 1][...]      # [1,  D_{l+1}] f32
            z = jnp.dot(h, w, preferred_element_type=jnp.float32) + b
            if use_scale:
                z = z * scale                   # broadcast [TB,1] over lanes
            z = jnp.maximum(z, 0.0)             # ReLU; Dropout identity (inference)
            h = z.astype(compute_dtype) if l + 1 < num_layers else z
        out_ref[...] = h.astype(out_ref.dtype)

    return kernel


def _choose_tb(B, block_b):
    """Pick a batch tile: multiple of 8, divides B if possible, grid >= 2 steps."""
    if B <= 8:
        return B
    cap = min(block_b, B)
    best = None
    t = (cap // 8) * 8
    while t >= 8:
        if B % t == 0:
            best = t
            break
        t -= 8
    if best is None:
        best = max(8, (cap // 8) * 8)           # padding fallback (rare)
    # Keep >= 2 grid steps so the "parallel" axis shards across both TCs (v7x).
    if best == B and B >= 16 and (B // 2) % 8 == 0:
        best = B // 2
    return best


def dnn_forward(params, x, task_scale=None, *, block_b=256,
                compute_dtype=jnp.bfloat16, out_dtype=None):
    """Pallas forward for the DNN module.

    params: list of (W [d_in, d_out], b [d_out]) per hidden layer.
    x: [B, input_dim] float32.
    task_scale: optional [B] or [B, 1] float32.
    """
    B, d_in = x.shape
    num_layers = len(params)
    out_dim = params[-1][0].shape[1]
    use_scale = task_scale is not None
    out_dtype = jnp.dtype(x.dtype if out_dtype is None else out_dtype)

    tb = _choose_tb(B, block_b)
    grid_b = pl.cdiv(B, tb)
    b_pad = grid_b * tb

    # tb is chosen to divide B, so this pad is normally a no-op.
    xp = x if b_pad == B else jnp.pad(x, ((0, b_pad - B), (0, 0)))

    inputs = []
    if use_scale:
        ts = jnp.asarray(task_scale, jnp.float32).reshape(B, 1)
        if b_pad != B:
            ts = jnp.pad(ts, ((0, b_pad - B), (0, 0)))
        inputs.append(ts)
    inputs.append(xp)

    weight_bytes = 0
    for (w, b) in params:
        wc = w.astype(compute_dtype)               # host-side pre-cast (once)
        bf = b.astype(jnp.float32).reshape(1, -1)  # f32 bias row
        inputs.append(wc)
        inputs.append(bf)
        weight_bytes += (int(wc.size) * jnp.dtype(compute_dtype).itemsize
                         + int(bf.size) * 4)

    # VMEM budget: resident weights (x2 safety), double-buffered x/out tiles,
    # per-layer f32 intermediates, plus headroom.
    max_dim = max([d_in] + [w.shape[1] for (w, _) in params])
    vmem_need = (2 * weight_bytes
                 + 2 * tb * d_in * int(jnp.dtype(x.dtype).itemsize)
                 + 2 * tb * out_dim * int(out_dtype.itemsize)
                 + 4 * tb * max_dim * 4
                 + (2 * tb * 4 if use_scale else 0))
    vmem_limit = int(min(max(2 * vmem_need, 32 << 20), 64 << 20))

    kernel = make_dnn_kernel(num_layers, use_scale, compute_dtype)
    out_shape = jax.ShapeDtypeStruct((b_pad, out_dim), out_dtype)
    out_spec = pl.BlockSpec((tb, out_dim), lambda i: (i, 0))

    def run(single_buffer_weights):
        in_specs = []
        if use_scale:
            in_specs.append(pl.BlockSpec((tb, 1), lambda i: (i, 0)))
        in_specs.append(pl.BlockSpec((tb, d_in), lambda i: (i, 0)))
        for (w, b) in params:
            wshape, bshape = w.shape, (1, b.size)
            if single_buffer_weights:
                # Constant index_map => block never changes; one buffer is
                # enough (default double-buffering just wastes VMEM).
                in_specs.append(pl.BlockSpec(wshape, lambda i: (0, 0),
                                             pipeline_mode=pl.Buffered(1)))
                in_specs.append(pl.BlockSpec(bshape, lambda i: (0, 0),
                                             pipeline_mode=pl.Buffered(1)))
            else:
                in_specs.append(pl.BlockSpec(wshape, lambda i: (0, 0)))
                in_specs.append(pl.BlockSpec(bshape, lambda i: (0, 0)))
        fn = pl.pallas_call(
            kernel,
            out_shape=out_shape,
            grid=(grid_b,),
            in_specs=in_specs,
            out_specs=out_spec,
            compiler_params=pltpu.CompilerParams(
                dimension_semantics=("parallel",),
                vmem_limit_bytes=vmem_limit),
        )
        return fn(*inputs)

    try:
        out = run(single_buffer_weights=True)
    except Exception:
        # Fallback if this Pallas build rejects single-buffered BlockSpecs.
        out = run(single_buffer_weights=False)

    return out if b_pad == B else out[:B]


def dnn_reference(params, x, task_scale=None):
    """Pure-JAX reference matching the PyTorch module (inference)."""
    h = x
    if task_scale is not None:
        task_scale = jnp.asarray(task_scale, jnp.float32).reshape(-1, 1)
    for (w, b) in params:
        h = h @ w + b.reshape(1, -1)
        if task_scale is not None:
            h = h * task_scale
        h = jnp.maximum(h, 0.0)
    return h


def init_linear(key, fan_in, fan_out):
    """PyTorch nn.Linear-style init; weight stored as [in, out]."""
    k1, k2 = jax.random.split(key)
    bound = 1.0 / (fan_in ** 0.5)
    w = jax.random.uniform(k1, (fan_in, fan_out), jnp.float32, -bound, bound)
    b = jax.random.uniform(k2, (fan_out,), jnp.float32, -bound, bound)
    return w, b


def init_params(key, input_dim, hidden_dims):
    dims = [input_dim] + list(hidden_dims)
    keys = jax.random.split(key, len(hidden_dims))
    return [init_linear(keys[i], dims[i], dims[i + 1])
            for i in range(len(hidden_dims))]


if __name__ == "__main__":
    # 128-aligned hidden dims (lane-dense output stores) and a batch that tiles
    # into >= 2 grid steps without padding.
    batch = 256
    input_dim = 64
    hidden_dims = [128, 128]

    key = jax.random.PRNGKey(0)
    kp, kx, ks = jax.random.split(key, 3)
    params = init_params(kp, input_dim, hidden_dims)
    x = jax.random.normal(kx, (batch, input_dim), jnp.float32)
    # Per-sample positive task scale (as produced by ECENet's TaskEnhancedNetwork).
    task_scale = 1.0 + jax.nn.sigmoid(
        jax.random.normal(ks, (batch, 1), jnp.float32))

    ref = dnn_reference(params, x, task_scale)

    # Default (perf) path: bf16 matmul operands, f32 accumulation/elementwise.
    out = dnn_forward(params, x, task_scale)
    jax.block_until_ready(out)
    assert out.shape == (batch, hidden_dims[-1])
    assert jnp.allclose(out, ref, rtol=5e-2, atol=5e-2), (
        float(jnp.max(jnp.abs(out - ref))))

    # Exact-parity path (f32 matmul operands).
    out_f32 = dnn_forward(params, x, task_scale, compute_dtype=jnp.float32)
    jax.block_until_ready(out_f32)
    assert jnp.allclose(out_f32, ref, rtol=1e-2, atol=1e-3), (
        float(jnp.max(jnp.abs(out_f32 - ref))))

    # task_scale=None path.
    out_ns = dnn_forward(params, x, None)
    jax.block_until_ready(out_ns)
    ref_ns = dnn_reference(params, x, None)
    assert jnp.allclose(out_ns, ref_ns, rtol=5e-2, atol=5e-2)

    print("KERNEL_OK")
</pallas_src>

<mosaic_0001>
module attributes {stable_mosaic.version = 11 : i64} {
  func.func @kernel(%arg0: i32, %arg1: memref<128x1xf32, #tpu.memory_space<vmem>>, %arg2: memref<128x64xf32, #tpu.memory_space<vmem>>, %arg3: memref<64x128xbf16, #tpu.memory_space<vmem>>, %arg4: memref<1x128xf32, #tpu.memory_space<vmem>>, %arg5: memref<128x128xbf16, #tpu.memory_space<vmem>>, %arg6: memref<1x128xf32, #tpu.memory_space<vmem>>, %arg7: memref<128x128xf32, #tpu.memory_space<vmem>>) attributes {dimension_semantics = [#tpu.dimension_semantics<parallel>], iteration_bounds = array<i64: 2>, scalar_prefetch = 0 : i64, scratch_operands = 0 : i64, tpu.core_type = #tpu.core_type<tc>, window_params = [{transform_indices = @transform_0, window_bounds = array<i64: 128, 1>}, {transform_indices = @transform_1, window_bounds = array<i64: 128, 64>}, {pipeline_mode = #tpu.pipeline_mode<synchronous>, transform_indices = @transform_2, window_bounds = array<i64: 64, 128>}, {pipeline_mode = #tpu.pipeline_mode<synchronous>, transform_indices = @transform_3, window_bounds = array<i64: 1, 128>}, {pipeline_mode = #tpu.pipeline_mode<synchronous>, transform_indices = @transform_4, window_bounds = array<i64: 128, 128>}, {pipeline_mode = #tpu.pipeline_mode<synchronous>, transform_indices = @transform_5, window_bounds = array<i64: 1, 128>}, {transform_indices = @transform_6, window_bounds = array<i64: 128, 128>}]} {
    %c0 = arith.constant 0 : index
    %c0_0 = arith.constant 0 : index
    %0 = vector.load %arg1[%c0, %c0_0] : memref<128x1xf32, #tpu.memory_space<vmem>>, vector<128x1xf32>
    %c0_1 = arith.constant 0 : index
    %c0_2 = arith.constant 0 : index
    %1 = vector.load %arg2[%c0_1, %c0_2] : memref<128x64xf32, #tpu.memory_space<vmem>>, vector<128x64xf32>
    %2 = arith.truncf %1 : vector<128x64xf32> to vector<128x64xbf16>
    %c0_3 = arith.constant 0 : index
    %c0_4 = arith.constant 0 : index
    %3 = vector.load %arg3[%c0_3, %c0_4] : memref<64x128xbf16, #tpu.memory_space<vmem>>, vector<64x128xbf16>
    %c0_5 = arith.constant 0 : index
    %c0_6 = arith.constant 0 : index
    %4 = vector.load %arg4[%c0_5, %c0_6] : memref<1x128xf32, #tpu.memory_space<vmem>>, vector<1x128xf32>
    %cst = arith.constant dense<0.000000e+00> : vector<128x128xf32>
    %5 = tpu.matmul %2, %3, %cst {dimension_numbers = #tpu.dot_dimension_numbers<[1], [0], [0], [1], [0, 0, 1, 1], [], []>} : vector<128x64xbf16>, vector<64x128xbf16>, vector<128x128xf32> -> vector<128x128xf32>
    %6 = vector.broadcast %4 : vector<1x128xf32> to vector<128x128xf32>
    %7 = arith.addf %5, %6 : vector<128x128xf32>
    %8 = vector.broadcast %0 : vector<128x1xf32> to vector<128x128xf32>
    %9 = arith.mulf %7, %8 : vector<128x128xf32>
    %cst_7 = arith.constant 0.000000e+00 : f32
    %10 = vector.broadcast %cst_7 : f32 to vector<128x128xf32>
    %11 = arith.maximumf %9, %10 : vector<128x128xf32>
    %12 = arith.truncf %11 : vector<128x128xf32> to vector<128x128xbf16>
    %c0_8 = arith.constant 0 : index
    %c0_9 = arith.constant 0 : index
    %13 = vector.load %arg5[%c0_8, %c0_9] : memref<128x128xbf16, #tpu.memory_space<vmem>>, vector<128x128xbf16>
    %c0_10 = arith.constant 0 : index
    %c0_11 = arith.constant 0 : index
    %14 = vector.load %arg6[%c0_10, %c0_11] : memref<1x128xf32, #tpu.memory_space<vmem>>, vector<1x128xf32>
    %cst_12 = arith.constant dense<0.000000e+00> : vector<128x128xf32>
    %15 = tpu.matmul %12, %13, %cst_12 {dimension_numbers = #tpu.dot_dimension_numbers<[1], [0], [0], [1], [0, 0, 1, 1], [], []>} : vector<128x128xbf16>, vector<128x128xbf16>, vector<128x128xf32> -> vector<128x128xf32>
    %16 = vector.broadcast %14 : vector<1x128xf32> to vector<128x128xf32>
    %17 = arith.addf %15, %16 : vector<128x128xf32>
    %18 = vector.broadcast %0 : vector<128x1xf32> to vector<128x128xf32>
    %19 = arith.mulf %17, %18 : vector<128x128xf32>
    %cst_13 = arith.constant 0.000000e+00 : f32
    %20 = vector.broadcast %cst_13 : f32 to vector<128x128xf32>
    %21 = arith.maximumf %19, %20 : vector<128x128xf32>
    %c0_14 = arith.constant 0 : index
    %c0_15 = arith.constant 0 : index
    %22 = vector.load %arg7[%c0_14, %c0_15] : memref<128x128xf32, #tpu.memory_space<vmem>>, vector<128x128xf32>
    tpu.vector_store %arg7[%c0_14, %c0_15], %21 {strides = array<i32>} : memref<128x128xf32, #tpu.memory_space<vmem>>, vector<128x128xf32>,
    return
  }
  func.func @transform_0(%arg0: i32) -> (i32, i32) {
    %c0_i32 = arith.constant 0 : i32
    %c0_i32_0 = arith.constant 0 : i32
    return %arg0, %c0_i32 : i32, i32
  }
  func.func @transform_1(%arg0: i32) -> (i32, i32) {
    %c0_i32 = arith.constant 0 : i32
    %c0_i32_0 = arith.constant 0 : i32
    return %arg0, %c0_i32 : i32, i32
  }
  func.func @transform_2(%arg0: i32) -> (i32, i32) {
    %c0_i32 = arith.constant 0 : i32
    %c0_i32_0 = arith.constant 0 : i32
    %c0_i32_1 = arith.constant 0 : i32
    return %c0_i32, %c0_i32_0 : i32, i32
  }
  func.func @transform_3(%arg0: i32) -> (i32, i32) {
    %c0_i32 = arith.constant 0 : i32
    %c0_i32_0 = arith.constant 0 : i32
    %c0_i32_1 = arith.constant 0 : i32
    return %c0_i32, %c0_i32_0 : i32, i32
  }
  func.func @transform_4(%arg0: i32) -> (i32, i32) {
    %c0_i32 = arith.constant 0 : i32
    %c0_i32_0 = arith.constant 0 : i32
    %c0_i32_1 = arith.constant 0 : i32
    return %c0_i32, %c0_i32_0 : i32, i32
  }
  func.func @transform_5(%arg0: i32) -> (i32, i32) {
    %c0_i32 = arith.constant 0 : i32
    %c0_i32_0 = arith.constant 0 : i32
    %c0_i32_1 = arith.constant 0 : i32
    return %c0_i32, %c0_i32_0 : i32, i32
  }
  func.func @transform_6(%arg0: i32) -> (i32, i32) {
    %c0_i32 = arith.constant 0 : i32
    %c0_i32_0 = arith.constant 0 : i32
    return %arg0, %c0_i32 : i32, i32
  }
}

module attributes {stable_mosaic.version = 11 : i64} {
  func.func @kernel(%arg0: i32, %arg1: memref<128x1xf32, #tpu.memory_space<vmem>>, %arg2: memref<128x64xf32, #tpu.memory_space<vmem>>, %arg3: memref<64x128xbf16, #tpu.memory_space<vmem>>, %arg4: memref<1x128xf32, #tpu.memory_space<vmem>>, %arg5: memref<128x128xbf16, #tpu.memory_space<vmem>>, %arg6: memref<1x128xf32, #tpu.memory_space<vmem>>, %arg7: memref<128x128xf32, #tpu.memory_space<vmem>>) attributes {dimension_semantics = [#tpu.dimension_semantics<parallel>], iteration_bounds = array<i64: 2>, scalar_prefetch = 0 : i64, scratch_operands = 0 : i64, tpu.core_type = #tpu.core_type<tc>, window_params = [{transform_indices = @transform_0, window_bounds = array<i64: 128, 1>}, {transform_indices = @transform_1, window_bounds = array<i64: 128, 64>}, {pipeline_mode = #tpu.pipeline_mode<synchronous>, transform_indices = @transform_2, window_bounds = array<i64: 64, 128>}, {pipeline_mode = #tpu.pipeline_mode<synchronous>, transform_indices = @transform_3, window_bounds = array<i64: 1, 128>}, {pipeline_mode = #tpu.pipeline_mode<synchronous>, transform_indices = @transform_4, window_bounds = array<i64: 128, 128>}, {pipeline_mode = #tpu.pipeline_mode<synchronous>, transform_indices = @transform_5, window_bounds = array<i64: 1, 128>}, {transform_indices = @transform_6, window_bounds = array<i64: 128, 128>}]} {
    %c0 = arith.constant 0 : index
    %c0_0 = arith.constant 0 : index
    %0 = vector.load %arg1[%c0, %c0_0] : memref<128x1xf32, #tpu.memory_space<vmem>>, vector<128x1xf32>
    %c0_1 = arith.constant 0 : index
    %c0_2 = arith.constant 0 : index
    %1 = vector.load %arg2[%c0_1, %c0_2] : memref<128x64xf32, #tpu.memory_space<vmem>>, vector<128x64xf32>
    %2 = arith.truncf %1 : vector<128x64xf32> to vector<128x64xbf16>
    %c0_3 = arith.constant 0 : index
    %c0_4 = arith.constant 0 : index
    %3 = vector.load %arg3[%c0_3, %c0_4] : memref<64x128xbf16, #tpu.memory_space<vmem>>, vector<64x128xbf16>
    %c0_5 = arith.constant 0 : index
    %c0_6 = arith.constant 0 : index
    %4 = vector.load %arg4[%c0_5, %c0_6] : memref<1x128xf32, #tpu.memory_space<vmem>>, vector<1x128xf32>
    %cst = arith.constant dense<0.000000e+00> : vector<128x128xf32>
    %5 = tpu.matmul %2, %3, %cst {dimension_numbers = #tpu.dot_dimension_numbers<[1], [0], [0], [1], [0, 0, 1, 1], [], []>} : vector<128x64xbf16>, vector<64x128xbf16>, vector<128x128xf32> -> vector<128x128xf32>
    %6 = vector.broadcast %4 : vector<1x128xf32> to vector<128x128xf32>
    %7 = arith.addf %5, %6 : vector<128x128xf32>
    %8 = vector.broadcast %0 : vector<128x1xf32> to vector<128x128xf32>
    %9 = arith.mulf %7, %8 : vector<128x128xf32>
    %cst_7 = arith.constant 0.000000e+00 : f32
    %10 = vector.broadcast %cst_7 : f32 to vector<128x128xf32>
    %11 = arith.maximumf %9, %10 : vector<128x128xf32>
    %12 = arith.truncf %11 : vector<128x128xf32> to vector<128x128xbf16>
    %c0_8 = arith.constant 0 : index
    %c0_9 = arith.constant 0 : index
    %13 = vector.load %arg5[%c0_8, %c0_9] : memref<128x128xbf16, #tpu.memory_space<vmem>>, vector<128x128xbf16>
    %c0_10 = arith.constant 0 : index
    %c0_11 = arith.constant 0 : index
    %14 = vector.load %arg6[%c0_10, %c0_11] : memref<1x128xf32, #tpu.memory_space<vmem>>, vector<1x128xf32>
    %cst_12 = arith.constant dense<0.000000e+00> : vector<128x128xf32>
    %15 = tpu.matmul %12, %13, %cst_12 {dimension_numbers = #tpu.dot_dimension_numbers<[1], [0], [0], [1], [0, 0, 1, 1], [], []>} : vector<128x128xbf16>, vector<128x128xbf16>, vector<128x128xf32> -> vector<128x128xf32>
    %16 = vector.broadcast %14 : vector<1x128xf32> to vector<128x128xf32>
    %17 = arith.addf %15, %16 : vector<128x128xf32>
    %18 = vector.broadcast %0 : vector<128x1xf32> to vector<128x128xf32>
    %19 = arith.mulf %17, %18 : vector<128x128xf32>
    %cst_13 = arith.constant 0.000000e+00 : f32
    %20 = vector.broadcast %cst_13 : f32 to vector<128x128xf32>
    %21 = arith.maximumf %19, %20 : vector<128x128xf32>
    %c0_14 = arith.constant 0 : index
    %c0_15 = arith.constant 0 : index
    %22 = vector.load %arg7[%c0_14, %c0_15] : memref<128x128xf32, #tpu.memory_space<vmem>>, vector<128x128xf32>
    tpu.vector_store %arg7[%c0_14, %c0_15], %21 {strides = array<i32>} : memref<128x128xf32, #tpu.memory_space<vmem>>, vector<128x128xf32>,
    return
  }
  func.func @transform_0(%arg0: i32) -> (i32, i32) {
    %c0_i32 = arith.constant 0 : i32
    %c0_i32_0 = arith.constant 0 : i32
    return %arg0, %c0_i32 : i32, i32
  }
  func.func @transform_1(%arg0: i32) -> (i32, i32) {
    %c0_i32 = arith.constant 0 : i32
    %c0_i32_0 = arith.constant 0 : i32
    return %arg0, %c0_i32 : i32, i32
  }
  func.func @transform_2(%arg0: i32) -> (i32, i32) {
    %c0_i32 = arith.constant 0 : i32
    %c0_i32_0 = arith.constant 0 : i32
    %c0_i32_1 = arith.constant 0 : i32
    return %c0_i32, %c0_i32_0 : i32, i32
  }
  func.func @transform_3(%arg0: i32) -> (i32, i32) {
    %c0_i32 = arith.constant 0 : i32
    %c0_i32_0 = arith.constant 0 : i32
    %c0_i32_1 = arith.constant 0 : i32
    return %c0_i32, %c0_i32_0 : i32, i32
  }
  func.func @transform_4(%arg0: i32) -> (i32, i32) {
    %c0_i32 = arith.constant 0 : i32
    %c0_i32_0 = arith.constant 0 : i32
    %c0_i32_1 = arith.constant 0 : i32
    return %c0_i32, %c0_i32_0 : i32, i32
  }
  func.func @transform_5(%arg0: i32) -> (i32, i32) {
    %c0_i32 = arith.constant 0 : i32
    %c0_i32_0 = arith.constant 0 : i32
    %c0_i32_1 = arith.constant 0 : i32
    return %c0_i32, %c0_i32_0 : i32, i32
  }
  func.func @transform_6(%arg0: i32) -> (i32, i32) {
    %c0_i32 = arith.constant 0 : i32
    %c0_i32_0 = arith.constant 0 : i32
    return %arg0, %c0_i32 : i32, i32
  }
}

</mosaic_0001>

<llo_original>
// kernel: tpu_custom_call.1
$region0: #{tpu_custom_call.1}
  #allocation0 [shape = 'u32[]', space=smem, size = 0x4, offset = 0x4, fixed_abs, tag = 'smem constant byte address 0x4 - core index']
  #allocation1 [shape = 'u32[144,128]{1,0:T(1,128)}', space=vmem, size = 0x12000, scoped, tag = 'internal scratch']
  %s0 = inlined_call_operand.vmem [shape: f32[256,1], index: 0, kind: input, shape index: {}]
  %s1 = inlined_call_operand.vmem [shape: f32[256,64], index: 1, kind: input, shape index: {}]
  %s2 = inlined_call_operand.vmem [shape: bf16[64,128], index: 2, kind: input, shape index: {}]
  %s3 = inlined_call_operand.vmem [shape: f32[1,128], index: 3, kind: input, shape index: {}]
  %s4 = inlined_call_operand.vmem [shape: bf16[128,128], index: 4, kind: input, shape index: {}]
  %s5 = inlined_call_operand.vmem [shape: f32[1,128], index: 5, kind: input, shape index: {}]
  %s6 = inlined_call_operand.hbm [shape: f32[256,128], index: 6, kind: output, shape index: {}]
  %s7 = sld [smem:[#allocation0]]
  $region57: #{tpu_custom_call.1} parent=0
    _
  %s9 = ssub.s32 1, %s7
  %s10 = scalar_select 0, %s9, %s7
  $region1: #{tpu_custom_call.1} parent=0
    #allocation2 [shape = 'u8[131072]{0}', space=vmem, size = 0x20000, scoped, tag = 'output window, operand 0']
    #allocation3 [shape = 's32[2]{0}', space=sflag, size = 0x8, scoped, tag = 'scoped memory for tpu_custom_call.1']
    %11 = vsyncpa [#allocation3], 0
    %s12 = scalar_lea.sflag [#allocation3], 1
    %13 = vsyncpa %s12, 0
    loop: start=0, step=1, limit=4
    $region2: #{tpu_custom_call.1} parent=1 // loop_pre_header
      _
    $region3: #{tpu_custom_call.1} parent=1 // loop_header
      %s15 = sphi 0, %s19
      %p16 = scmp.ge.s32.totalorder %s15, 4
      %s25 = sphi 0, %s27
      %s28 = sphi 0, %s25
      %s29 = sphi 0, %s28
      %s45 = sphi 0, %s29
      %s51 = sphi 0, %s53
      %s54 = sphi 0, %s51
      %s55 = sphi 0, %s54
      %s71 = sphi 0, %s55
      %s75 = sphi 0, %s75
      %s77 = sphi 0, %s75
      %s78 = sphi 0, %s77
      %s92 = sphi 0, %s78
      %s96 = sphi 0, %s96
      %s98 = sphi 0, %s96
      %s99 = sphi 0, %s98
      %s113 = sphi 0, %s99
      %s117 = sphi 0, %s117
      %s119 = sphi 0, %s117
      %s120 = sphi 0, %s119
      %s134 = sphi 0, %s120
      %s138 = sphi 0, %s138
      %s140 = sphi 0, %s138
      %s141 = sphi 0, %s140
      %s155 = sphi 0, %s141
      %s161 = sphi 0, %s163
      %s164 = sphi 0, %s161
      %s165 = sphi 0, %s164
      %s181 = sphi 0, %s165
    $region4: #{tpu_custom_call.1} parent=1 // loop_header_branch
      %18 = sbr.rel (%p16) target = $region8
    $region5: #{tpu_custom_call.1} parent=1 // loop_body
      %s20 = ssub.s32 %s15, 1
      %s21 = ssub.s32 %s15, 2
      %s22 = sadd.s32 %s15, 1
      %s23 = ssub.s32 %s15, %s22
      %p24 = scmp.eq.s32.totalorder %s23, 0
      %s26 = sadd.s32 %s25, 1
      %s27 = scalar_select %p24, %s25, %s26
      %p30 = pneg %p24
      %p31 = scmp.eq.s32.totalorder %s15, 1
      %p32 = por %p30, %p31
      %p33 = scmp.ne.s32.totalorder %s25, %s28
      %p34 = scmp.eq.s32.totalorder %s15, 0
      %p35 = por %p33, %p34
      %p36 = scmp.ne.s32.totalorder %s25, %s28
      %p37 = scmp.eq.s32.totalorder %s20, 1
      %p38 = por %p36, %p37
      %p39 = scmp.ne.s32.totalorder %s28, %s29
      %p40 = scmp.eq.s32.totalorder %s20, 0
      %p41 = por %p39, %p40
      %p42 = scmp.ne.s32.totalorder %s28, %s29
      %p43 = scmp.eq.s32.totalorder %s21, 1
      %p44 = por %p42, %p43
      %p46 = scmp.ne.s32.totalorder %s29, %s45
      %p47 = scmp.eq.s32.totalorder %s21, 0
      %p48 = por %p46, %p47
      %s49 = ssub.s32 %s15, %s22
      %p50 = scmp.eq.s32.totalorder %s49, 0
      %s52 = sadd.s32 %s51, 1
      %s53 = scalar_select %p50, %s51, %s52
      %p56 = pneg %p50
      %p57 = scmp.eq.s32.totalorder %s15, 1
      %p58 = por %p56, %p57
      %p59 = scmp.ne.s32.totalorder %s51, %s54
      %p60 = scmp.eq.s32.totalorder %s15, 0
      %p61 = por %p59, %p60
      %p62 = scmp.ne.s32.totalorder %s51, %s54
      %p63 = scmp.eq.s32.totalorder %s20, 1
      %p64 = por %p62, %p63
      %p65 = scmp.ne.s32.totalorder %s54, %s55
      %p66 = scmp.eq.s32.totalorder %s20, 0
      %p67 = por %p65, %p66
      %p68 = scmp.ne.s32.totalorder %s54, %s55
      %p69 = scmp.eq.s32.totalorder %s21, 1
      %p70 = por %p68, %p69
      %p72 = scmp.ne.s32.totalorder %s55, %s71
      %p73 = scmp.eq.s32.totalorder %s21, 0
      %p74 = por %p72, %p73
      %s76 = sadd.s32 %s75, 1
      %p79 = scmp.eq.s32.totalorder %s15, 1
      %p80 = scmp.ne.s32.totalorder %s75, %s77
      %p81 = scmp.eq.s32.totalorder %s15, 0
      %p82 = por %p80, %p81
      %p83 = scmp.ne.s32.totalorder %s75, %s77
      %p84 = scmp.eq.s32.totalorder %s20, 1
      %p85 = por %p83, %p84
      %p86 = scmp.ne.s32.totalorder %s77, %s78
      %p87 = scmp.eq.s32.totalorder %s20, 0
      %p88 = por %p86, %p87
      %p89 = scmp.ne.s32.totalorder %s77, %s78
      %p90 = scmp.eq.s32.totalorder %s21, 1
      %p91 = por %p89, %p90
      %p93 = scmp.ne.s32.totalorder %s78, %s92
      %p94 = scmp.eq.s32.totalorder %s21, 0
      %p95 = por %p93, %p94
      %s97 = sadd.s32 %s96, 1
      %p100 = scmp.eq.s32.totalorder %s15, 1
      %p101 = scmp.ne.s32.totalorder %s96, %s98
      %p102 = scmp.eq.s32.totalorder %s15, 0
      %p103 = por %p101, %p102
      %p104 = scmp.ne.s32.totalorder %s96, %s98
      %p105 = scmp.eq.s32.totalorder %s20, 1
      %p106 = por %p104, %p105
      %p107 = scmp.ne.s32.totalorder %s98, %s99
      %p108 = scmp.eq.s32.totalorder %s20, 0
      %p109 = por %p107, %p108
      %p110 = scmp.ne.s32.totalorder %s98, %s99
      %p111 = scmp.eq.s32.totalorder %s21, 1
      %p112 = por %p110, %p111
      %p114 = scmp.ne.s32.totalorder %s99, %s113
      %p115 = scmp.eq.s32.totalorder %s21, 0
      %p116 = por %p114, %p115
      %s118 = sadd.s32 %s117, 1
      %p121 = scmp.eq.s32.totalorder %s15, 1
      %p122 = scmp.ne.s32.totalorder %s117, %s119
      %p123 = scmp.eq.s32.totalorder %s15, 0
      %p124 = por %p122, %p123
      %p125 = scmp.ne.s32.totalorder %s117, %s119
      %p126 = scmp.eq.s32.totalorder %s20, 1
      %p127 = por %p125, %p126
      %p128 = scmp.ne.s32.totalorder %s119, %s120
      %p129 = scmp.eq.s32.totalorder %s20, 0
      %p130 = por %p128, %p129
      %p131 = scmp.ne.s32.totalorder %s119, %s120
      %p132 = scmp.eq.s32.totalorder %s21, 1
      %p133 = por %p131, %p132
      %p135 = scmp.ne.s32.totalorder %s120, %s134
      %p136 = scmp.eq.s32.totalorder %s21, 0
      %p137 = por %p135, %p136
      %s139 = sadd.s32 %s138, 1
      %p142 = scmp.eq.s32.totalorder %s15, 1
      %p143 = scmp.ne.s32.totalorder %s138, %s140
      %p144 = scmp.eq.s32.totalorder %s15, 0
      %p145 = por %p143, %p144
      %p146 = scmp.ne.s32.totalorder %s138, %s140
      %p147 = scmp.eq.s32.totalorder %s20, 1
      %p148 = por %p146, %p147
      %p149 = scmp.ne.s32.totalorder %s140, %s141
      %p150 = scmp.eq.s32.totalorder %s20, 0
      %p151 = por %p149, %p150
      %p152 = scmp.ne.s32.totalorder %s140, %s141
      %p153 = scmp.eq.s32.totalorder %s21, 1
      %p154 = por %p152, %p153
      %p156 = scmp.ne.s32.totalorder %s141, %s155
      %p157 = scmp.eq.s32.totalorder %s21, 0
      %p158 = por %p156, %p157
      %s159 = ssub.s32 %s15, %s22
      %p160 = scmp.eq.s32.totalorder %s159, 0
      %s162 = sadd.s32 %s161, 1
      %s163 = scalar_select %p160, %s161, %s162
      %p166 = pneg %p160
      %p167 = scmp.eq.s32.totalorder %s15, 1
      %p168 = por %p166, %p167
      %p169 = scmp.ne.s32.totalorder %s161, %s164
      %p170 = scmp.eq.s32.totalorder %s15, 0
      %p171 = por %p169, %p170
      %p172 = scmp.ne.s32.totalorder %s161, %s164
      %p173 = scmp.eq.s32.totalorder %s20, 1
      %p174 = por %p172, %p173
      %p175 = scmp.ne.s32.totalorder %s164, %s165
      %p176 = scmp.eq.s32.totalorder %s20, 0
      %p177 = por %p175, %p176
      %p178 = scmp.ne.s32.totalorder %s164, %s165
      %p179 = scmp.eq.s32.totalorder %s21, 1
      %p180 = por %p178, %p179
      %p182 = scmp.ne.s32.totalorder %s165, %s181
      %p183 = scmp.eq.s32.totalorder %s21, 0
      %p184 = por %p182, %p183
      %p185 = scmp.le.s32.totalorder 1, %s15
      %p186 = scmp.lt.s32.totalorder %s15, 3
      %p187 = pnand %p185, %p186
      %p188 = pneg %p187
      // Predicated region
      $region9: #{tpu_custom_call.1} parent=5 // pred_check
        _
      $region10: #{tpu_custom_call.1} parent=5 // pred_check_branch
        %190 = sbr.rel (%p187) target = $region12
      $region11: #{tpu_custom_call.1} parent=5 // pred_region
        %s191 = ssub.s32 %s15, 1
        // Predicated region
        $region13: #{tpu_custom_call.1} parent=11 // pred_check
          %p192 = pneg %p88
        $region14: #{tpu_custom_call.1} parent=11 // pred_check_branch
          %194 = sbr.rel (%p192) target = $region16
        $region15: #{tpu_custom_call.1} parent=11 // pred_region
          _
        $region16: #{tpu_custom_call.1} parent=11 // pred_fallthru
          _
        // Predicated region
        $region17: #{tpu_custom_call.1} parent=11 // pred_check
          %p195 = pneg %p109
        $region18: #{tpu_custom_call.1} parent=11 // pred_check_branch
          %197 = sbr.rel (%p195) target = $region20
        $region19: #{tpu_custom_call.1} parent=11 // pred_region
          _
        $region20: #{tpu_custom_call.1} parent=11 // pred_fallthru
          _
        // Predicated region
        $region21: #{tpu_custom_call.1} parent=11 // pred_check
          %p198 = pneg %p130
        $region22: #{tpu_custom_call.1} parent=11 // pred_check_branch
          %200 = sbr.rel (%p198) target = $region24
        $region23: #{tpu_custom_call.1} parent=11 // pred_region
          _
        $region24: #{tpu_custom_call.1} parent=11 // pred_fallthru
          _
        // Predicated region
        $region25: #{tpu_custom_call.1} parent=11 // pred_check
          %p201 = pneg %p151
        $region26: #{tpu_custom_call.1} parent=11 // pred_check_branch
          %203 = sbr.rel (%p201) target = $region28
        $region27: #{tpu_custom_call.1} parent=11 // pred_region
          _
        $region28: #{tpu_custom_call.1} parent=11 // pred_fallthru
          _
      $region12: #{tpu_custom_call.1} parent=5 // pred_fallthru
        _
      %p204 = scmp.lt.s32.totalorder %s15, 2
      // Predicated region
      $region29: #{tpu_custom_call.1} parent=5 // pred_check
        %p205 = pneg %p204
      $region30: #{tpu_custom_call.1} parent=5 // pred_check_branch
        %207 = sbr.rel (%p205) target = $region32
      $region31: #{tpu_custom_call.1} parent=5 // pred_region
        // Predicated region
        $region33: #{tpu_custom_call.1} parent=31 // pred_check
          %p208 = pneg %p35
        $region34: #{tpu_custom_call.1} parent=31 // pred_check_branch
          %210 = sbr.rel (%p208) target = $region36
        $region35: #{tpu_custom_call.1} parent=31 // pred_region
          %s211 = smul.u32 16, %s15
          %p212 = scmp.lt.s32.totalorder %s211, 31
          %s213 = scalar_select %p212, %s211, 31
          %s214 = smul.addr %s213, 8
          %s215 = scalar_lea.vmem %s0, %s214
          %s216 = smul.u32 16, %s15
        $region36: #{tpu_custom_call.1} parent=31 // pred_fallthru
          _
        // Predicated region
        $region37: #{tpu_custom_call.1} parent=31 // pred_check
          %p217 = pneg %p61
        $region38: #{tpu_custom_call.1} parent=31 // pred_check_branch
          %219 = sbr.rel (%p217) target = $region40
        $region39: #{tpu_custom_call.1} parent=31 // pred_region
          %s220 = smul.u32 16, %s15
          %p221 = scmp.lt.s32.totalorder %s220, 31
          %s222 = scalar_select %p221, %s220, 31
          %s223 = smul.addr %s222, 8
          %s224 = scalar_lea.vmem %s1, %s223
          %s225 = smul.u32 16, %s15
        $region40: #{tpu_custom_call.1} parent=31 // pred_fallthru
          _
      $region32: #{tpu_custom_call.1} parent=5 // pred_fallthru
        _
      %p226 = scmp.le.s32.totalorder 1, %s15
      %p227 = scmp.lt.s32.totalorder %s15, 3
      %p228 = pnand %p226, %p227
      %p229 = pneg %p228
      // Predicated region
      $region41: #{tpu_custom_call.1} parent=5 // pred_check
        _
      $region42: #{tpu_custom_call.1} parent=5 // pred_check_branch
        %231 = sbr.rel (%p228) target = $region44
      $region43: #{tpu_custom_call.1} parent=5 // pred_region
        %s232 = ssub.s32 %s15, 1
        %s233 = smul.u32 16, %s20
        %p234 = scmp.lt.s32.totalorder %s233, 31
        %s235 = scalar_select %p234, %s233, 31
        %s236 = smul.addr %s235, 8
        %s237 = scalar_lea.vmem %s0, %s236
        %p238 = pneg %p41
        %p239 = pneg %p38
        %s240 = smul.u32 16, %s20
        %p241 = scmp.lt.s32.totalorder %s240, 31
        %s242 = scalar_select %p241, %s240, 31
        %s243 = smul.addr %s242, 8
        %s244 = scalar_lea.vmem %s1, %s243
        %p245 = pneg %p67
        %p246 = pneg %p64
        %p247 = pneg %p88
        %p248 = pneg %p85
        %p249 = pneg %p109
        %p250 = pneg %p106
        %p251 = pneg %p130
        %p252 = pneg %p127
        %p253 = pneg %p151
        %p254 = pneg %p148
        %p255 = pneg %p177
        %p256 = pneg %p174
        %s257 = sand.u32 %s164, 1
        %s258 = scalar_lea.sflag [#allocation3], %s257
        %s259 = sand.u32 %s164, 1
        %s260 = smul.addr %s259, 128
        %s261 = scalar_lea.vmem [#allocation2], %s260
        %s262 = smul.u32 16, %s20
        %p263 = scmp.lt.s32.totalorder %s262, 31
        %s264 = scalar_select %p263, %s262, 31
        %s265 = smul.addr %s264, 8
        %s266 = scalar_lea.vmem %s0, %s265
        %s267 = smul.u32 16, %s20
        %s268 = smul.u32 16, %s20
        %p269 = scmp.lt.s32.totalorder %s268, 31
        %s270 = scalar_select %p269, %s268, 31
        %s271 = smul.addr %s270, 8
        %s272 = scalar_lea.vmem %s1, %s271
        %s273 = smul.u32 16, %s20
        %s274 = smul.u32 16, %s20
        %v276 = vld [vmem:[%s266] sm:$0xff]
        %v277 = vld [vmem:[%s266 + $0x8] sm:$0xff]
        %v278 = vld [vmem:[%s266 + $0x10] sm:$0xff]
        %v279 = vld [vmem:[%s266 + $0x18] sm:$0xff]
        %v280 = vld [vmem:[%s266 + $0x20] sm:$0xff]
        %v281 = vld [vmem:[%s266 + $0x28] sm:$0xff]
        %v282 = vld [vmem:[%s266 + $0x30] sm:$0xff]
        %v283 = vld [vmem:[%s266 + $0x38] sm:$0xff]
        %v284 = vld [vmem:[%s266 + $0x40] sm:$0xff]
        %v285 = vld [vmem:[%s266 + $0x48] sm:$0xff]
        %v286 = vld [vmem:[%s266 + $0x50] sm:$0xff]
        %v287 = vld [vmem:[%s266 + $0x58] sm:$0xff]
        %v288 = vld [vmem:[%s266 + $0x60] sm:$0xff]
        %v289 = vld [vmem:[%s266 + $0x68] sm:$0xff]
        %v290 = vld [vmem:[%s266 + $0x70] sm:$0xff]
        %v291 = vld [vmem:[%s266 + $0x78] sm:$0xff]
        %v292 = vld [vmem:[%s272] sm:$0xff]
        %v293 = vld [vmem:[%s272 + $0x8] sm:$0xff]
        %v294 = vld [vmem:[%s272 + $0x10] sm:$0xff]
        %v295 = vld [vmem:[%s272 + $0x18] sm:$0xff]
        %v296 = vld [vmem:[%s272 + $0x20] sm:$0xff]
        %v297 = vld [vmem:[%s272 + $0x28] sm:$0xff]
        %v298 = vld [vmem:[%s272 + $0x30] sm:$0xff]
        %v299 = vld [vmem:[%s272 + $0x38] sm:$0xff]
        %v300 = vld [vmem:[%s272 + $0x40] sm:$0xff]
        %v301 = vld [vmem:[%s272 + $0x48] sm:$0xff]
        %v302 = vld [vmem:[%s272 + $0x50] sm:$0xff]
        %v303 = vld [vmem:[%s272 + $0x58] sm:$0xff]
        %v304 = vld [vmem:[%s272 + $0x60] sm:$0xff]
        %v305 = vld [vmem:[%s272 + $0x68] sm:$0xff]
        %v306 = vld [vmem:[%s272 + $0x70] sm:$0xff]
        %v307 = vld [vmem:[%s272 + $0x78] sm:$0xff]
        %v308 = vpack.c.bf16 %v293, %v292
        %v309 = vpack.c.bf16 %v295, %v294
        %v310 = vpack.c.bf16 %v297, %v296
        %v311 = vpack.c.bf16 %v299, %v298
        %v312 = vpack.c.bf16 %v301, %v300
        %v313 = vpack.c.bf16 %v303, %v302
        %v314 = vpack.c.bf16 %v305, %v304
        %v315 = vpack.c.bf16 %v307, %v306
        %v316 = vld [vmem:[%s2] sm:$0xf]
        %v317 = vld [vmem:[%s2 + $0x4] sm:$0xf]
        %v318 = vld [vmem:[%s2 + $0x8] sm:$0xf]
        %v319 = vld [vmem:[%s2 + $0xc] sm:$0xf]
        %v320 = vld [vmem:[%s2 + $0x10] sm:$0xf]
        %v321 = vld [vmem:[%s2 + $0x14] sm:$0xf]
        %v322 = vld [vmem:[%s2 + $0x18] sm:$0xf]
        %v323 = vld [vmem:[%s2 + $0x1c] sm:$0xf]
        %v324 = vld [vmem:[%s3] sm:$0x1]
        %v326 = vlaneseq
        %v327 = vshrl.u32 %v326, 7
        %v328 = vsub.s32 0, %v327
        %v329 = vrot.slane %v324, %v328
        %v339 = vunpack.c.l.b16 %v316
        %v340 = vunpack.c.l.b16 %v317
        %v341 = vunpack.c.l.b16 %v318
        %v342 = vunpack.c.l.b16 %v319
        %v343 = vunpack.c.l.b16 %v320
        %v344 = vunpack.c.l.b16 %v321
        %v345 = vunpack.c.l.b16 %v322
        %v346 = vunpack.c.l.b16 %v323
        %v347 = vpack.c.b16 %v340, %v339
        %v348 = vpack.c.b16 %v342, %v341
        %v349 = vpack.c.b16 %v344, %v343
        %v350 = vpack.c.b16 %v346, %v345
        %vm355 = vcmask 523264
        %v357 = vsel %vm355, %v308, 0
        %v360 = vsel %vm355, %v309, 0
        %v363 = vsel %vm355, %v310, 0
        %v366 = vsel %vm355, %v311, 0
        %v369 = vsel %vm355, %v312, 0
        %v372 = vsel %vm355, %v313, 0
        %v375 = vsel %vm355, %v314, 0
        %v378 = vsel %vm355, %v315, 0
        %380 = vmatprep.subr.bf16.mxu0 0
        %381 = vmatpush1.bf16.msra.mxu0 %v347
        %382 = vmatprep.subr.bf16.mxu0 0
        %383 = vmatpush1.bf16.msra.mxu0 %v348
        %384 = vmatprep.subr.bf16.mxu0 0
        %385 = vmatpush1.bf16.msra.mxu0 %v349
        %386 = vmatprep.subr.bf16.mxu0 0
        %387 = vmatpush1.bf16.msra.mxu0 %v350
        %388 = vmatprep.subr.bf16.mxu0 0
        %389 = vmatpush1.bf16.msra.mxu0 0
        %390 = vmatprep.subr.bf16.mxu0 0
        %391 = vmatpush1.bf16.msra.mxu0 0
        %392 = vmatprep.subr.bf16.mxu0 0
        %393 = vmatpush1.bf16.msra.mxu0 0
        %394 = vmatprep.subr.bf16.mxu0 0
        %395 = vmatpush1.bf16.msra.mxu0 0
        %396 = vmatprep.subr.bf16.mxu0 0
        %397 = vmatpush1.bf16.msra.mxu0 0
        %398 = vmatprep.subr.bf16.mxu0 0
        %399 = vmatpush1.bf16.msra.mxu0 0
        %400 = vmatprep.subr.bf16.mxu0 0
        %401 = vmatpush1.bf16.msra.mxu0 0
        %402 = vmatprep.subr.bf16.mxu0 0
        %403 = vmatpush1.bf16.msra.mxu0 0
        %404 = vmatprep.subr.bf16.mxu0 0
        %405 = vmatpush1.bf16.msra.mxu0 0
        %406 = vmatprep.subr.bf16.mxu0 0
        %407 = vmatpush1.bf16.msra.mxu0 0
        %408 = vmatprep.subr.bf16.mxu0 0
        %409 = vmatpush1.bf16.msra.mxu0 0
        %410 = vmatprep.subr.bf16.mxu0 0
        %411 = vmatpush1.bf16.msra.mxu0 0
        %412 = vmatprep.mubr.bf16.mxu0 0
        %413 = vmatmul.mubr.bf16.gmra.mrb[0].mxu0 %v357
        %v414 = vpop.f32.mrb[0].mxu0
        %v415 = vadd.f32 %v329, %v414
        %v416 = vpop.f32.mrb[0].mxu0
        %v417 = vpop.f32.mrb[0].mxu0
        %v418 = vadd.f32 %v329, %v417
        %v419 = vpop.f32.mrb[0].mxu0
        %420 = vmatprep.mubr.bf16.mxu0 0
        %421 = vmatmul.mubr.bf16.gmra.mrb[0].mxu0 %v360
        %v422 = vpop.f32.mrb[0].mxu0
        %v423 = vadd.f32 %v329, %v422
        %v424 = vpop.f32.mrb[0].mxu0
        %v425 = vpop.f32.mrb[0].mxu0
        %v426 = vadd.f32 %v329, %v425
        %v427 = vpop.f32.mrb[0].mxu0
        %428 = vmatprep.mubr.bf16.mxu0 0
        %429 = vmatmul.mubr.bf16.gmra.mrb[0].mxu0 %v363
        %v430 = vpop.f32.mrb[0].mxu0
        %v431 = vadd.f32 %v329, %v430
        %v432 = vpop.f32.mrb[0].mxu0
        %v433 = vpop.f32.mrb[0].mxu0
        %v434 = vadd.f32 %v329, %v433
        %v435 = vpop.f32.mrb[0].mxu0
        %436 = vmatprep.mubr.bf16.mxu0 0
        %437 = vmatmul.mubr.bf16.gmra.mrb[0].mxu0 %v366
        %v438 = vpop.f32.mrb[0].mxu0
        %v439 = vadd.f32 %v329, %v438
        %v440 = vpop.f32.mrb[0].mxu0
        %v441 = vpop.f32.mrb[0].mxu0
        %v442 = vadd.f32 %v329, %v441
        %v443 = vpop.f32.mrb[0].mxu0
        %444 = vmatprep.mubr.bf16.mxu0 0
        %445 = vmatmul.mubr.bf16.gmra.mrb[0].mxu0 %v369
        %v446 = vpop.f32.mrb[0].mxu0
        %v447 = vadd.f32 %v329, %v446
        %v448 = vpop.f32.mrb[0].mxu0
        %v449 = vpop.f32.mrb[0].mxu0
        %v450 = vadd.f32 %v329, %v449
        %v451 = vpop.f32.mrb[0].mxu0
        %452 = vmatprep.mubr.bf16.mxu0 0
        %453 = vmatmul.mubr.bf16.gmra.mrb[0].mxu0 %v372
        %v454 = vpop.f32.mrb[0].mxu0
        %v455 = vadd.f32 %v329, %v454
        %v456 = vpop.f32.mrb[0].mxu0
        %v457 = vpop.f32.mrb[0].mxu0
        %v458 = vadd.f32 %v329, %v457
        %v459 = vpop.f32.mrb[0].mxu0
        %460 = vmatprep.mubr.bf16.mxu0 0
        %461 = vmatmul.mubr.bf16.gmra.mrb[0].mxu0 %v375
        %v462 = vpop.f32.mrb[0].mxu0
        %v463 = vadd.f32 %v329, %v462
        %v464 = vpop.f32.mrb[0].mxu0
        %v465 = vpop.f32.mrb[0].mxu0
        %v466 = vadd.f32 %v329, %v465
        %v467 = vpop.f32.mrb[0].mxu0
        %468 = vmatprep.mubr.bf16.mxu0 0
        %469 = vmatmul.mubr.bf16.gmra.mrb[0].mxu0 %v378
        %v470 = vpop.f32.mrb[0].mxu0
        %v471 = vadd.f32 %v329, %v470
        %v472 = vpop.f32.mrb[0].mxu0
        %v473 = vpop.f32.mrb[0].mxu0
        %v474 = vadd.f32 %v329, %v473
        %v475 = vpop.f32.mrb[0].mxu0
        %476 = vdwg.mxu0
        %478 = vset.pattern.permute.xlu0 0
        %479 = vperm.xlu0 %478, %v276
        %v480 = vpop.permute.xlu0 %479
        %483 = vset.pattern.permute.xlu0 0
        %484 = vperm.xlu0 %483, %v277
        %v485 = vpop.permute.xlu0 %484
        %488 = vset.pattern.permute.xlu0 0
        %489 = vperm.xlu0 %488, %v278
        %v490 = vpop.permute.xlu0 %489
        %493 = vset.pattern.permute.xlu0 0
        %494 = vperm.xlu0 %493, %v279
        %v495 = vpop.permute.xlu0 %494
        %498 = vset.pattern.permute.xlu0 0
        %499 = vperm.xlu0 %498, %v280
        %v500 = vpop.permute.xlu0 %499
        %503 = vset.pattern.permute.xlu0 0
        %504 = vperm.xlu0 %503, %v281
        %v505 = vpop.permute.xlu0 %504
        %508 = vset.pattern.permute.xlu0 0
        %509 = vperm.xlu0 %508, %v282
        %v510 = vpop.permute.xlu0 %509
        %513 = vset.pattern.permute.xlu0 0
        %514 = vperm.xlu0 %513, %v283
        %v515 = vpop.permute.xlu0 %514
        %518 = vset.pattern.permute.xlu0 0
        %519 = vperm.xlu0 %518, %v284
        %v520 = vpop.permute.xlu0 %519
        %523 = vset.pattern.permute.xlu0 0
        %524 = vperm.xlu0 %523, %v285
        %v525 = vpop.permute.xlu0 %524
        %528 = vset.pattern.permute.xlu0 0
        %529 = vperm.xlu0 %528, %v286
        %v530 = vpop.permute.xlu0 %529
        %533 = vset.pattern.permute.xlu0 0
        %534 = vperm.xlu0 %533, %v287
        %v535 = vpop.permute.xlu0 %534
        %538 = vset.pattern.permute.xlu0 0
        %539 = vperm.xlu0 %538, %v288
        %v540 = vpop.permute.xlu0 %539
        %543 = vset.pattern.permute.xlu0 0
        %544 = vperm.xlu0 %543, %v289
        %v545 = vpop.permute.xlu0 %544
        %548 = vset.pattern.permute.xlu0 0
        %549 = vperm.xlu0 %548, %v290
        %v550 = vpop.permute.xlu0 %549
        %553 = vset.pattern.permute.xlu0 0
        %554 = vperm.xlu0 %553, %v291
        %v555 = vpop.permute.xlu0 %554
        %v557 = vmul.f32 %v415, %v480
        %v558 = vmul.f32 %v418, %v485
        %v559 = vmul.f32 %v423, %v490
        %v560 = vmul.f32 %v426, %v495
        %v561 = vmul.f32 %v431, %v500
        %v562 = vmul.f32 %v434, %v505
        %v563 = vmul.f32 %v439, %v510
        %v564 = vmul.f32 %v442, %v515
        %v565 = vmul.f32 %v447, %v520
        %v566 = vmul.f32 %v450, %v525
        %v567 = vmul.f32 %v455, %v530
        %v568 = vmul.f32 %v458, %v535
        %v569 = vmul.f32 %v463, %v540
        %v570 = vmul.f32 %v466, %v545
        %v571 = vmul.f32 %v471, %v550
        %v572 = vmul.f32 %v474, %v555
        %v573 = vmax.f32 %v557, 0.0
        %v574 = vmax.f32 %v558, 0.0
        %v575 = vmax.f32 %v559, 0.0
        %v576 = vmax.f32 %v560, 0.0
        %v577 = vmax.f32 %v561, 0.0
        %v578 = vmax.f32 %v562, 0.0
        %v579 = vmax.f32 %v563, 0.0
        %v580 = vmax.f32 %v564, 0.0
        %v581 = vmax.f32 %v565, 0.0
        %v582 = vmax.f32 %v566, 0.0
        %v583 = vmax.f32 %v567, 0.0
        %v584 = vmax.f32 %v568, 0.0
        %v585 = vmax.f32 %v569, 0.0
        %v586 = vmax.f32 %v570, 0.0
        %v587 = vmax.f32 %v571, 0.0
        %v588 = vmax.f32 %v572, 0.0
        %v589 = vpack.c.bf16 %v574, %v573
        %v590 = vpack.c.bf16 %v576, %v575
        %v591 = vpack.c.bf16 %v578, %v577
        %v592 = vpack.c.bf16 %v580, %v579
        %v593 = vpack.c.bf16 %v582, %v581
        %v594 = vpack.c.bf16 %v584, %v583
        %v595 = vpack.c.bf16 %v586, %v585
        %v596 = vpack.c.bf16 %v588, %v587
        %v597 = vld [vmem:[%s4] sm:$0xf]
        %v598 = vld [vmem:[%s4 + $0x4] sm:$0xf]
        %v599 = vld [vmem:[%s4 + $0x8] sm:$0xf]
        %v600 = vld [vmem:[%s4 + $0xc] sm:$0xf]
        %v601 = vld [vmem:[%s4 + $0x10] sm:$0xf]
        %v602 = vld [vmem:[%s4 + $0x14] sm:$0xf]
        %v603 = vld [vmem:[%s4 + $0x18] sm:$0xf]
        %v604 = vld [vmem:[%s4 + $0x1c] sm:$0xf]
        %v605 = vld [vmem:[%s4 + $0x20] sm:$0xf]
        %v606 = vld [vmem:[%s4 + $0x24] sm:$0xf]
        %v607 = vld [vmem:[%s4 + $0x28] sm:$0xf]
        %v608 = vld [vmem:[%s4 + $0x2c] sm:$0xf]
        %v609 = vld [vmem:[%s4 + $0x30] sm:$0xf]
        %v610 = vld [vmem:[%s4 + $0x34] sm:$0xf]
        %v611 = vld [vmem:[%s4 + $0x38] sm:$0xf]
        %v612 = vld [vmem:[%s4 + $0x3c] sm:$0xf]
        %v613 = vld [vmem:[%s5] sm:$0x1]
        %v615 = vlaneseq
        %v616 = vshrl.u32 %v615, 7
        %v617 = vsub.s32 0, %v616
        %v618 = vrot.slane %v613, %v617
        %v636 = vunpack.c.l.b16 %v597
        %v637 = vunpack.c.l.b16 %v598
        %v638 = vunpack.c.l.b16 %v599
        %v639 = vunpack.c.l.b16 %v600
        %v640 = vunpack.c.l.b16 %v601
        %v641 = vunpack.c.l.b16 %v602
        %v642 = vunpack.c.l.b16 %v603
        %v643 = vunpack.c.l.b16 %v604
        %v644 = vunpack.c.l.b16 %v605
        %v645 = vunpack.c.l.b16 %v606
        %v646 = vunpack.c.l.b16 %v607
        %v647 = vunpack.c.l.b16 %v608
        %v648 = vunpack.c.l.b16 %v609
        %v649 = vunpack.c.l.b16 %v610
        %v650 = vunpack.c.l.b16 %v611
        %v651 = vunpack.c.l.b16 %v612
        %v652 = vpack.c.b16 %v637, %v636
        %v653 = vpack.c.b16 %v639, %v638
        %v654 = vpack.c.b16 %v641, %v640
        %v655 = vpack.c.b16 %v643, %v642
        %v656 = vpack.c.b16 %v645, %v644
        %v657 = vpack.c.b16 %v647, %v646
        %v658 = vpack.c.b16 %v649, %v648
        %v659 = vpack.c.b16 %v651, %v650
        %668 = vmatprep.subr.bf16.mxu0 0
        %669 = vmatpush1.bf16.msra.mxu0 %v652
        %670 = vmatprep.subr.bf16.mxu0 0
        %671 = vmatpush1.bf16.msra.mxu0 %v653
        %672 = vmatprep.subr.bf16.mxu0 0
        %673 = vmatpush1.bf16.msra.mxu0 %v654
        %674 = vmatprep.subr.bf16.mxu0 0
        %675 = vmatpush1.bf16.msra.mxu0 %v655
        %676 = vmatprep.subr.bf16.mxu0 0
        %677 = vmatpush1.bf16.msra.mxu0 %v656
        %678 = vmatprep.subr.bf16.mxu0 0
        %679 = vmatpush1.bf16.msra.mxu0 %v657
        %680 = vmatprep.subr.bf16.mxu0 0
        %681 = vmatpush1.bf16.msra.mxu0 %v658
        %682 = vmatprep.subr.bf16.mxu0 0
        %683 = vmatpush1.bf16.msra.mxu0 %v659
        %684 = vmatprep.subr.bf16.mxu0 0
        %685 = vmatpush1.bf16.msra.mxu0 0
        %686 = vmatprep.subr.bf16.mxu0 0
        %687 = vmatpush1.bf16.msra.mxu0 0
        %688 = vmatprep.subr.bf16.mxu0 0
        %689 = vmatpush1.bf16.msra.mxu0 0
        %690 = vmatprep.subr.bf16.mxu0 0
        %691 = vmatpush1.bf16.msra.mxu0 0
        %692 = vmatprep.subr.bf16.mxu0 0
        %693 = vmatpush1.bf16.msra.mxu0 0
        %694 = vmatprep.subr.bf16.mxu0 0
        %695 = vmatpush1.bf16.msra.mxu0 0
        %696 = vmatprep.subr.bf16.mxu0 0
        %697 = vmatpush1.bf16.msra.mxu0 0
        %698 = vmatprep.subr.bf16.mxu0 0
        %699 = vmatpush1.bf16.msra.mxu0 0
        %700 = vmatprep.mubr.bf16.mxu0 0
        %701 = vmatmul.mubr.bf16.gmra.mrb[0].mxu0 %v589
        %v702 = vpop.f32.mrb[0].mxu0
        %v703 = vadd.f32 %v618, %v702
        %v704 = vpop.f32.mrb[0].mxu0
        %v705 = vpop.f32.mrb[0].mxu0
        %v706 = vadd.f32 %v618, %v705
        %v707 = vpop.f32.mrb[0].mxu0
        %708 = vmatprep.mubr.bf16.mxu0 0
        %709 = vmatmul.mubr.bf16.gmra.mrb[0].mxu0 %v590
        %v710 = vpop.f32.mrb[0].mxu0
        %v711 = vadd.f32 %v618, %v710
        %v712 = vpop.f32.mrb[0].mxu0
        %v713 = vpop.f32.mrb[0].mxu0
        %v714 = vadd.f32 %v618, %v713
        %v715 = vpop.f32.mrb[0].mxu0
        %716 = vmatprep.mubr.bf16.mxu0 0
        %717 = vmatmul.mubr.bf16.gmra.mrb[0].mxu0 %v591
        %v718 = vpop.f32.mrb[0].mxu0
        %v719 = vadd.f32 %v618, %v718
        %v720 = vpop.f32.mrb[0].mxu0
        %v721 = vpop.f32.mrb[0].mxu0
        %v722 = vadd.f32 %v618, %v721
        %v723 = vpop.f32.mrb[0].mxu0
        %724 = vmatprep.mubr.bf16.mxu0 0
        %725 = vmatmul.mubr.bf16.gmra.mrb[0].mxu0 %v592
        %v726 = vpop.f32.mrb[0].mxu0
        %v727 = vadd.f32 %v618, %v726
        %v728 = vpop.f32.mrb[0].mxu0
        %v729 = vpop.f32.mrb[0].mxu0
        %v730 = vadd.f32 %v618, %v729
        %v731 = vpop.f32.mrb[0].mxu0
        %732 = vmatprep.mubr.bf16.mxu0 0
        %733 = vmatmul.mubr.bf16.gmra.mrb[0].mxu0 %v593
        %v734 = vpop.f32.mrb[0].mxu0
        %v735 = vadd.f32 %v618, %v734
        %v736 = vpop.f32.mrb[0].mxu0
        %v737 = vpop.f32.mrb[0].mxu0
        %v738 = vadd.f32 %v618, %v737
        %v739 = vpop.f32.mrb[0].mxu0
        %740 = vmatprep.mubr.bf16.mxu0 0
        %741 = vmatmul.mubr.bf16.gmra.mrb[0].mxu0 %v594
        %v742 = vpop.f32.mrb[0].mxu0
        %v743 = vadd.f32 %v618, %v742
        %v744 = vpop.f32.mrb[0].mxu0
        %v745 = vpop.f32.mrb[0].mxu0
        %v746 = vadd.f32 %v618, %v745
        %v747 = vpop.f32.mrb[0].mxu0
        %748 = vmatprep.mubr.bf16.mxu0 0
        %749 = vmatmul.mubr.bf16.gmra.mrb[0].mxu0 %v595
        %v750 = vpop.f32.mrb[0].mxu0
        %v751 = vadd.f32 %v618, %v750
        %v752 = vpop.f32.mrb[0].mxu0
        %v753 = vpop.f32.mrb[0].mxu0
        %v754 = vadd.f32 %v618, %v753
        %v755 = vpop.f32.mrb[0].mxu0
        %756 = vmatprep.mubr.bf16.mxu0 0
        %757 = vmatmul.mubr.bf16.gmra.mrb[0].mxu0 %v596
        %v758 = vpop.f32.mrb[0].mxu0
        %v759 = vadd.f32 %v618, %v758
        %v760 = vpop.f32.mrb[0].mxu0
        %v761 = vpop.f32.mrb[0].mxu0
        %v762 = vadd.f32 %v618, %v761
        %v763 = vpop.f32.mrb[0].mxu0
        %764 = vdwg.mxu0
        %v765 = vmul.f32 %v703, %v480
        %v766 = vmul.f32 %v706, %v485
        %v767 = vmul.f32 %v711, %v490
        %v768 = vmul.f32 %v714, %v495
        %v769 = vmul.f32 %v719, %v500
        %v770 = vmul.f32 %v722, %v505
        %v771 = vmul.f32 %v727, %v510
        %v772 = vmul.f32 %v730, %v515
        %v773 = vmul.f32 %v735, %v520
        %v774 = vmul.f32 %v738, %v525
        %v775 = vmul.f32 %v743, %v530
        %v776 = vmul.f32 %v746, %v535
        %v777 = vmul.f32 %v751, %v540
        %v778 = vmul.f32 %v754, %v545
        %v779 = vmul.f32 %v759, %v550
        %v780 = vmul.f32 %v762, %v555
        %v781 = vmax.f32 %v765, 0.0
        %v782 = vmax.f32 %v766, 0.0
        %v783 = vmax.f32 %v767, 0.0
        %v784 = vmax.f32 %v768, 0.0
        %v785 = vmax.f32 %v769, 0.0
        %v786 = vmax.f32 %v770, 0.0
        %v787 = vmax.f32 %v771, 0.0
        %v788 = vmax.f32 %v772, 0.0
        %v789 = vmax.f32 %v773, 0.0
        %v790 = vmax.f32 %v774, 0.0
        %v791 = vmax.f32 %v775, 0.0
        %v792 = vmax.f32 %v776, 0.0
        %v793 = vmax.f32 %v777, 0.0
        %v794 = vmax.f32 %v778, 0.0
        %v795 = vmax.f32 %v779, 0.0
        %v796 = vmax.f32 %v780, 0.0
        %797 = vst [vmem:[%s261] sm:$0xff] %v781
        %798 = vst [vmem:[%s261 + $0x8] sm:$0xff] %v782
        %799 = vst [vmem:[%s261 + $0x10] sm:$0xff] %v783
        %800 = vst [vmem:[%s261 + $0x18] sm:$0xff] %v784
        %801 = vst [vmem:[%s261 + $0x20] sm:$0xff] %v785
        %802 = vst [vmem:[%s261 + $0x28] sm:$0xff] %v786
        %803 = vst [vmem:[%s261 + $0x30] sm:$0xff] %v787
        %804 = vst [vmem:[%s261 + $0x38] sm:$0xff] %v788
        %805 = vst [vmem:[%s261 + $0x40] sm:$0xff] %v789
        %806 = vst [vmem:[%s261 + $0x48] sm:$0xff] %v790
        %807 = vst [vmem:[%s261 + $0x50] sm:$0xff] %v791
        %808 = vst [vmem:[%s261 + $0x58] sm:$0xff] %v792
        %809 = vst [vmem:[%s261 + $0x60] sm:$0xff] %v793
        %810 = vst [vmem:[%s261 + $0x68] sm:$0xff] %v794
        %811 = vst [vmem:[%s261 + $0x70] sm:$0xff] %v795
        %812 = vst [vmem:[%s261 + $0x78] sm:$0xff] %v796
        %s813 = sand.u32 %s164, 1
        %s814 = scalar_lea.sflag [#allocation3], %s813
        %s815 = sand.u32 %s164, 1
        %s816 = smul.addr %s815, 128
        %s817 = scalar_lea.vmem [#allocation2], %s816
        // Predicated region
        $region45: #{tpu_custom_call.1} parent=43 // pred_check
          %p818 = pneg %p174
        $region46: #{tpu_custom_call.1} parent=43 // pred_check_branch
          %820 = sbr.rel (%p818) target = $region48
        $region47: #{tpu_custom_call.1} parent=43 // pred_region
          %s821 = smul.u32 16, %s20
          %s823 = ssub.s32 2048, 2048
          %824 = vsyncadd %s814, %s823
          %s825 = smul.addr %s821, 128
          %s826 = scalar_lea.hbm %s6, %s825
          %s827 = sshll.u32 %s817, 4
          %s828 = int_to_ptr.vmem [resolvable:$true] %s827
          %833 = dma.vmem_to_hbm [thread:$0]  %s828, 2048, %s826, %s814, 128, 128, 8
        $region48: #{tpu_custom_call.1} parent=43 // pred_fallthru
          _
      $region44: #{tpu_custom_call.1} parent=5 // pred_fallthru
        _
      %p834 = scmp.le.s32.totalorder 2, %s15
      // Predicated region
      $region49: #{tpu_custom_call.1} parent=5 // pred_check
        %p835 = pneg %p834
      $region50: #{tpu_custom_call.1} parent=5 // pred_check_branch
        %837 = sbr.rel (%p835) target = $region52
      $region51: #{tpu_custom_call.1} parent=5 // pred_region
        %s838 = ssub.s32 %s15, 2
        // Predicated region
        $region53: #{tpu_custom_call.1} parent=51 // pred_check
          %p839 = pneg %p180
        $region54: #{tpu_custom_call.1} parent=51 // pred_check_branch
          %841 = sbr.rel (%p839) target = $region56
        $region55: #{tpu_custom_call.1} parent=51 // pred_region
          %s842 = sand.u32 %s165, 1
          %s843 = scalar_lea.sflag [#allocation3], %s842
          %s844 = sand.u32 %s165, 1
          %s845 = smul.addr %s844, 128
          %s846 = scalar_lea.vmem [#allocation2], %s845
          %847 = dma.done %s843, 2048
        $region56: #{tpu_custom_call.1} parent=51 // pred_fallthru
          _
      $region52: #{tpu_custom_call.1} parent=5 // pred_fallthru
        _
    $region6: #{tpu_custom_call.1} parent=1 // loop_footer
      %s19 = sadd.s32 1, %s15
    $region7: #{tpu_custom_call.1} parent=1 // loop_footer_branch
      %14 = sbr.rel target = $region3
    $region8: #{tpu_custom_call.1} parent=1 // loop_exit
      _
    %848 = vsyncpa [#allocation3], 1
    %s849 = scalar_lea.sflag [#allocation3], 1
    %850 = vsyncpa %s849, 1

// kernel: tpu_custom_call.1
$region0: #{tpu_custom_call.1}
  #allocation0 [shape = 'u32[]', space=smem, size = 0x4, offset = 0x4, fixed_abs, tag = 'smem constant byte address 0x4 - core index']
  #allocation1 [shape = 'u32[144,128]{1,0:T(1,128)}', space=vmem, size = 0x12000, scoped, tag = 'internal scratch']
  %s0 = inlined_call_operand.vmem [shape: f32[256,1], index: 0, kind: input, shape index: {}]
  %s1 = inlined_call_operand.vmem [shape: f32[256,64], index: 1, kind: input, shape index: {}]
  %s2 = inlined_call_operand.vmem [shape: bf16[64,128], index: 2, kind: input, shape index: {}]
  %s3 = inlined_call_operand.vmem [shape: f32[1,128], index: 3, kind: input, shape index: {}]
  %s4 = inlined_call_operand.vmem [shape: bf16[128,128], index: 4, kind: input, shape index: {}]
  %s5 = inlined_call_operand.vmem [shape: f32[1,128], index: 5, kind: input, shape index: {}]
  %s6 = inlined_call_operand.hbm [shape: f32[256,128], index: 6, kind: output, shape index: {}]
  %s7 = sld [smem:[#allocation0]]
  $region57: #{tpu_custom_call.1} parent=0
    _
  %s9 = ssub.s32 1, %s7
  %s10 = scalar_select 0, %s9, %s7
  $region1: #{tpu_custom_call.1} parent=0
    #allocation2 [shape = 'u8[131072]{0}', space=vmem, size = 0x20000, scoped, tag = 'output window, operand 0']
    #allocation3 [shape = 's32[2]{0}', space=sflag, size = 0x8, scoped, tag = 'scoped memory for tpu_custom_call.1']
    %11 = vsyncpa [#allocation3], 0
    %s12 = scalar_lea.sflag [#allocation3], 1
    %13 = vsyncpa %s12, 0
    loop: start=0, step=1, limit=4
    $region2: #{tpu_custom_call.1} parent=1 // loop_pre_header
      _
    $region3: #{tpu_custom_call.1} parent=1 // loop_header
      %s15 = sphi 0, %s19
      %p16 = scmp.ge.s32.totalorder %s15, 4
      %s25 = sphi 0, %s27
      %s28 = sphi 0, %s25
      %s29 = sphi 0, %s28
      %s45 = sphi 0, %s29
      %s51 = sphi 0, %s53
      %s54 = sphi 0, %s51
      %s55 = sphi 0, %s54
      %s71 = sphi 0, %s55
      %s75 = sphi 0, %s75
      %s77 = sphi 0, %s75
      %s78 = sphi 0, %s77
      %s92 = sphi 0, %s78
      %s96 = sphi 0, %s96
      %s98 = sphi 0, %s96
      %s99 = sphi 0, %s98
      %s113 = sphi 0, %s99
      %s117 = sphi 0, %s117
      %s119 = sphi 0, %s117
      %s120 = sphi 0, %s119
      %s134 = sphi 0, %s120
      %s138 = sphi 0, %s138
      %s140 = sphi 0, %s138
      %s141 = sphi 0, %s140
      %s155 = sphi 0, %s141
      %s161 = sphi 0, %s163
      %s164 = sphi 0, %s161
      %s165 = sphi 0, %s164
      %s181 = sphi 0, %s165
    $region4: #{tpu_custom_call.1} parent=1 // loop_header_branch
      %18 = sbr.rel (%p16) target = $region8
    $region5: #{tpu_custom_call.1} parent=1 // loop_body
      %s20 = ssub.s32 %s15, 1
      %s21 = ssub.s32 %s15, 2
      %s22 = sadd.s32 %s15, 1
      %s23 = ssub.s32 %s15, %s22
      %p24 = scmp.eq.s32.totalorder %s23, 0
      %s26 = sadd.s32 %s25, 1
      %s27 = scalar_select %p24, %s25, %s26
      %p30 = pneg %p24
      %p31 = scmp.eq.s32.totalorder %s15, 1
      %p32 = por %p30, %p31
      %p33 = scmp.ne.s32.totalorder %s25, %s28
      %p34 = scmp.eq.s32.totalorder %s15, 0
      %p35 = por %p33, %p34
      %p36 = scmp.ne.s32.totalorder %s25, %s28
      %p37 = scmp.eq.s32.totalorder %s20, 1
      %p38 = por %p36, %p37
      %p39 = scmp.ne.s32.totalorder %s28, %s29
      %p40 = scmp.eq.s32.totalorder %s20, 0
      %p41 = por %p39, %p40
      %p42 = scmp.ne.s32.totalorder %s28, %s29
      %p43 = scmp.eq.s32.totalorder %s21, 1
      %p44 = por %p42, %p43
      %p46 = scmp.ne.s32.totalorder %s29, %s45
      %p47 = scmp.eq.s32.totalorder %s21, 0
      %p48 = por %p46, %p47
      %s49 = ssub.s32 %s15, %s22
      %p50 = scmp.eq.s32.totalorder %s49, 0
      %s52 = sadd.s32 %s51, 1
      %s53 = scalar_select %p50, %s51, %s52
      %p56 = pneg %p50
      %p57 = scmp.eq.s32.totalorder %s15, 1
      %p58 = por %p56, %p57
      %p59 = scmp.ne.s32.totalorder %s51, %s54
      %p60 = scmp.eq.s32.totalorder %s15, 0
      %p61 = por %p59, %p60
      %p62 = scmp.ne.s32.totalorder %s51, %s54
      %p63 = scmp.eq.s32.totalorder %s20, 1
      %p64 = por %p62, %p63
      %p65 = scmp.ne.s32.totalorder %s54, %s55
      %p66 = scmp.eq.s32.totalorder %s20, 0
      %p67 = por %p65, %p66
      %p68 = scmp.ne.s32.totalorder %s54, %s55
      %p69 = scmp.eq.s32.totalorder %s21, 1
      %p70 = por %p68, %p69
      %p72 = scmp.ne.s32.totalorder %s55, %s71
      %p73 = scmp.eq.s32.totalorder %s21, 0
      %p74 = por %p72, %p73
      %s76 = sadd.s32 %s75, 1
      %p79 = scmp.eq.s32.totalorder %s15, 1
      %p80 = scmp.ne.s32.totalorder %s75, %s77
      %p81 = scmp.eq.s32.totalorder %s15, 0
      %p82 = por %p80, %p81
      %p83 = scmp.ne.s32.totalorder %s75, %s77
      %p84 = scmp.eq.s32.totalorder %s20, 1
      %p85 = por %p83, %p84
      %p86 = scmp.ne.s32.totalorder %s77, %s78
      %p87 = scmp.eq.s32.totalorder %s20, 0
      %p88 = por %p86, %p87
      %p89 = scmp.ne.s32.totalorder %s77, %s78
      %p90 = scmp.eq.s32.totalorder %s21, 1
      %p91 = por %p89, %p90
      %p93 = scmp.ne.s32.totalorder %s78, %s92
      %p94 = scmp.eq.s32.totalorder %s21, 0
      %p95 = por %p93, %p94
      %s97 = sadd.s32 %s96, 1
      %p100 = scmp.eq.s32.totalorder %s15, 1
      %p101 = scmp.ne.s32.totalorder %s96, %s98
      %p102 = scmp.eq.s32.totalorder %s15, 0
      %p103 = por %p101, %p102
      %p104 = scmp.ne.s32.totalorder %s96, %s98
      %p105 = scmp.eq.s32.totalorder %s20, 1
      %p106 = por %p104, %p105
      %p107 = scmp.ne.s32.totalorder %s98, %s99
      %p108 = scmp.eq.s32.totalorder %s20, 0
      %p109 = por %p107, %p108
      %p110 = scmp.ne.s32.totalorder %s98, %s99
      %p111 = scmp.eq.s32.totalorder %s21, 1
      %p112 = por %p110, %p111
      %p114 = scmp.ne.s32.totalorder %s99, %s113
      %p115 = scmp.eq.s32.totalorder %s21, 0
      %p116 = por %p114, %p115
      %s118 = sadd.s32 %s117, 1
      %p121 = scmp.eq.s32.totalorder %s15, 1
      %p122 = scmp.ne.s32.totalorder %s117, %s119
      %p123 = scmp.eq.s32.totalorder %s15, 0
      %p124 = por %p122, %p123
      %p125 = scmp.ne.s32.totalorder %s117, %s119
      %p126 = scmp.eq.s32.totalorder %s20, 1
      %p127 = por %p125, %p126
      %p128 = scmp.ne.s32.totalorder %s119, %s120
      %p129 = scmp.eq.s32.totalorder %s20, 0
      %p130 = por %p128, %p129
      %p131 = scmp.ne.s32.totalorder %s119, %s120
      %p132 = scmp.eq.s32.totalorder %s21, 1
      %p133 = por %p131, %p132
      %p135 = scmp.ne.s32.totalorder %s120, %s134
      %p136 = scmp.eq.s32.totalorder %s21, 0
      %p137 = por %p135, %p136
      %s139 = sadd.s32 %s138, 1
      %p142 = scmp.eq.s32.totalorder %s15, 1
      %p143 = scmp.ne.s32.totalorder %s138, %s140
      %p144 = scmp.eq.s32.totalorder %s15, 0
      %p145 = por %p143, %p144
      %p146 = scmp.ne.s32.totalorder %s138, %s140
      %p147 = scmp.eq.s32.totalorder %s20, 1
      %p148 = por %p146, %p147
      %p149 = scmp.ne.s32.totalorder %s140, %s141
      %p150 = scmp.eq.s32.totalorder %s20, 0
      %p151 = por %p149, %p150
      %p152 = scmp.ne.s32.totalorder %s140, %s141
      %p153 = scmp.eq.s32.totalorder %s21, 1
      %p154 = por %p152, %p153
      %p156 = scmp.ne.s32.totalorder %s141, %s155
      %p157 = scmp.eq.s32.totalorder %s21, 0
      %p158 = por %p156, %p157
      %s159 = ssub.s32 %s15, %s22
      %p160 = scmp.eq.s32.totalorder %s159, 0
      %s162 = sadd.s32 %s161, 1
      %s163 = scalar_select %p160, %s161, %s162
      %p166 = pneg %p160
      %p167 = scmp.eq.s32.totalorder %s15, 1
      %p168 = por %p166, %p167
      %p169 = scmp.ne.s32.totalorder %s161, %s164
      %p170 = scmp.eq.s32.totalorder %s15, 0
      %p171 = por %p169, %p170
      %p172 = scmp.ne.s32.totalorder %s161, %s164
      %p173 = scmp.eq.s32.totalorder %s20, 1
      %p174 = por %p172, %p173
      %p175 = scmp.ne.s32.totalorder %s164, %s165
      %p176 = scmp.eq.s32.totalorder %s20, 0
      %p177 = por %p175, %p176
      %p178 = scmp.ne.s32.totalorder %s164, %s165
      %p179 = scmp.eq.s32.totalorder %s21, 1
      %p180 = por %p178, %p179
      %p182 = scmp.ne.s32.totalorder %s165, %s181
      %p183 = scmp.eq.s32.totalorder %s21, 0
      %p184 = por %p182, %p183
      %p185 = scmp.le.s32.totalorder 1, %s15
      %p186 = scmp.lt.s32.totalorder %s15, 3
      %p187 = pnand %p185, %p186
      %p188 = pneg %p187
      // Predicated region
      $region9: #{tpu_custom_call.1} parent=5 // pred_check
        _
      $region10: #{tpu_custom_call.1} parent=5 // pred_check_branch
        %190 = sbr.rel (%p187) target = $region12
      $region11: #{tpu_custom_call.1} parent=5 // pred_region
        %s191 = ssub.s32 %s15, 1
        // Predicated region
        $region13: #{tpu_custom_call.1} parent=11 // pred_check
          %p192 = pneg %p88
        $region14: #{tpu_custom_call.1} parent=11 // pred_check_branch
          %194 = sbr.rel (%p192) target = $region16
        $region15: #{tpu_custom_call.1} parent=11 // pred_region
          _
        $region16: #{tpu_custom_call.1} parent=11 // pred_fallthru
          _
        // Predicated region
        $region17: #{tpu_custom_call.1} parent=11 // pred_check
          %p195 = pneg %p109
        $region18: #{tpu_custom_call.1} parent=11 // pred_check_branch
          %197 = sbr.rel (%p195) target = $region20
        $region19: #{tpu_custom_call.1} parent=11 // pred_region
          _
        $region20: #{tpu_custom_call.1} parent=11 // pred_fallthru
          _
        // Predicated region
        $region21: #{tpu_custom_call.1} parent=11 // pred_check
          %p198 = pneg %p130
        $region22: #{tpu_custom_call.1} parent=11 // pred_check_branch
          %200 = sbr.rel (%p198) target = $region24
        $region23: #{tpu_custom_call.1} parent=11 // pred_region
          _
        $region24: #{tpu_custom_call.1} parent=11 // pred_fallthru
          _
        // Predicated region
        $region25: #{tpu_custom_call.1} parent=11 // pred_check
          %p201 = pneg %p151
        $region26: #{tpu_custom_call.1} parent=11 // pred_check_branch
          %203 = sbr.rel (%p201) target = $region28
        $region27: #{tpu_custom_call.1} parent=11 // pred_region
          _
        $region28: #{tpu_custom_call.1} parent=11 // pred_fallthru
          _
      $region12: #{tpu_custom_call.1} parent=5 // pred_fallthru
        _
      %p204 = scmp.lt.s32.totalorder %s15, 2
      // Predicated region
      $region29: #{tpu_custom_call.1} parent=5 // pred_check
        %p205 = pneg %p204
      $region30: #{tpu_custom_call.1} parent=5 // pred_check_branch
        %207 = sbr.rel (%p205) target = $region32
      $region31: #{tpu_custom_call.1} parent=5 // pred_region
        // Predicated region
        $region33: #{tpu_custom_call.1} parent=31 // pred_check
          %p208 = pneg %p35
        $region34: #{tpu_custom_call.1} parent=31 // pred_check_branch
          %210 = sbr.rel (%p208) target = $region36
        $region35: #{tpu_custom_call.1} parent=31 // pred_region
          %s211 = smul.u32 16, %s15
          %p212 = scmp.lt.s32.totalorder %s211, 31
          %s213 = scalar_select %p212, %s211, 31
          %s214 = smul.addr %s213, 8
          %s215 = scalar_lea.vmem %s0, %s214
          %s216 = smul.u32 16, %s15
        $region36: #{tpu_custom_call.1} parent=31 // pred_fallthru
          _
        // Predicated region
        $region37: #{tpu_custom_call.1} parent=31 // pred_check
          %p217 = pneg %p61
        $region38: #{tpu_custom_call.1} parent=31 // pred_check_branch
          %219 = sbr.rel (%p217) target = $region40
        $region39: #{tpu_custom_call.1} parent=31 // pred_region
          %s220 = smul.u32 16, %s15
          %p221 = scmp.lt.s32.totalorder %s220, 31
          %s222 = scalar_select %p221, %s220, 31
          %s223 = smul.addr %s222, 8
          %s224 = scalar_lea.vmem %s1, %s223
          %s225 = smul.u32 16, %s15
        $region40: #{tpu_custom_call.1} parent=31 // pred_fallthru
          _
      $region32: #{tpu_custom_call.1} parent=5 // pred_fallthru
        _
      %p226 = scmp.le.s32.totalorder 1, %s15
      %p227 = scmp.lt.s32.totalorder %s15, 3
      %p228 = pnand %p226, %p227
      %p229 = pneg %p228
      // Predicated region
      $region41: #{tpu_custom_call.1} parent=5 // pred_check
        _
      $region42: #{tpu_custom_call.1} parent=5 // pred_check_branch
        %231 = sbr.rel (%p228) target = $region44
      $region43: #{tpu_custom_call.1} parent=5 // pred_region
        %s232 = ssub.s32 %s15, 1
        %s233 = smul.u32 16, %s20
        %p234 = scmp.lt.s32.totalorder %s233, 31
        %s235 = scalar_select %p234, %s233, 31
        %s236 = smul.addr %s235, 8
        %s237 = scalar_lea.vmem %s0, %s236
        %p238 = pneg %p41
        %p239 = pneg %p38
        %s240 = smul.u32 16, %s20
        %p241 = scmp.lt.s32.totalorder %s240, 31
        %s242 = scalar_select %p241, %s240, 31
        %s243 = smul.addr %s242, 8
        %s244 = scalar_lea.vmem %s1, %s243
        %p245 = pneg %p67
        %p246 = pneg %p64
        %p247 = pneg %p88
        %p248 = pneg %p85
        %p249 = pneg %p109
        %p250 = pneg %p106
        %p251 = pneg %p130
        %p252 = pneg %p127
        %p253 = pneg %p151
        %p254 = pneg %p148
        %p255 = pneg %p177
        %p256 = pneg %p174
        %s257 = sand.u32 %s164, 1
        %s258 = scalar_lea.sflag [#allocation3], %s257
        %s259 = sand.u32 %s164, 1
        %s260 = smul.addr %s259, 128
        %s261 = scalar_lea.vmem [#allocation2], %s260
        %s262 = smul.u32 16, %s20
        %p263 = scmp.lt.s32.totalorder %s262, 31
        %s264 = scalar_select %p263, %s262, 31
        %s265 = smul.addr %s264, 8
        %s266 = scalar_lea.vmem %s0, %s265
        %s267 = smul.u32 16, %s20
        %s268 = smul.u32 16, %s20
        %p269 = scmp.lt.s32.totalorder %s268, 31
        %s270 = scalar_select %p269, %s268, 31
        %s271 = smul.addr %s270, 8
        %s272 = scalar_lea.vmem %s1, %s271
        %s273 = smul.u32 16, %s20
        %s274 = smul.u32 16, %s20
        %v276 = vld [vmem:[%s266] sm:$0xff]
        %v277 = vld [vmem:[%s266 + $0x8] sm:$0xff]
        %v278 = vld [vmem:[%s266 + $0x10] sm:$0xff]
        %v279 = vld [vmem:[%s266 + $0x18] sm:$0xff]
        %v280 = vld [vmem:[%s266 + $0x20] sm:$0xff]
        %v281 = vld [vmem:[%s266 + $0x28] sm:$0xff]
        %v282 = vld [vmem:[%s266 + $0x30] sm:$0xff]
        %v283 = vld [vmem:[%s266 + $0x38] sm:$0xff]
        %v284 = vld [vmem:[%s266 + $0x40] sm:$0xff]
        %v285 = vld [vmem:[%s266 + $0x48] sm:$0xff]
        %v286 = vld [vmem:[%s266 + $0x50] sm:$0xff]
        %v287 = vld [vmem:[%s266 + $0x58] sm:$0xff]
        %v288 = vld [vmem:[%s266 + $0x60] sm:$0xff]
        %v289 = vld [vmem:[%s266 + $0x68] sm:$0xff]
        %v290 = vld [vmem:[%s266 + $0x70] sm:$0xff]
        %v291 = vld [vmem:[%s266 + $0x78] sm:$0xff]
        %v292 = vld [vmem:[%s272] sm:$0xff]
        %v293 = vld [vmem:[%s272 + $0x8] sm:$0xff]
        %v294 = vld [vmem:[%s272 + $0x10] sm:$0xff]
        %v295 = vld [vmem:[%s272 + $0x18] sm:$0xff]
        %v296 = vld [vmem:[%s272 + $0x20] sm:$0xff]
        %v297 = vld [vmem:[%s272 + $0x28] sm:$0xff]
        %v298 = vld [vmem:[%s272 + $0x30] sm:$0xff]
        %v299 = vld [vmem:[%s272 + $0x38] sm:$0xff]
        %v300 = vld [vmem:[%s272 + $0x40] sm:$0xff]
        %v301 = vld [vmem:[%s272 + $0x48] sm:$0xff]
        %v302 = vld [vmem:[%s272 + $0x50] sm:$0xff]
        %v303 = vld [vmem:[%s272 + $0x58] sm:$0xff]
        %v304 = vld [vmem:[%s272 + $0x60] sm:$0xff]
        %v305 = vld [vmem:[%s272 + $0x68] sm:$0xff]
        %v306 = vld [vmem:[%s272 + $0x70] sm:$0xff]
        %v307 = vld [vmem:[%s272 + $0x78] sm:$0xff]
        %v308 = vpack.c.bf16 %v293, %v292
        %v309 = vpack.c.bf16 %v295, %v294
        %v310 = vpack.c.bf16 %v297, %v296
        %v311 = vpack.c.bf16 %v299, %v298
        %v312 = vpack.c.bf16 %v301, %v300
        %v313 = vpack.c.bf16 %v303, %v302
        %v314 = vpack.c.bf16 %v305, %v304
        %v315 = vpack.c.bf16 %v307, %v306
        %v316 = vld [vmem:[%s2] sm:$0xf]
        %v317 = vld [vmem:[%s2 + $0x4] sm:$0xf]
        %v318 = vld [vmem:[%s2 + $0x8] sm:$0xf]
        %v319 = vld [vmem:[%s2 + $0xc] sm:$0xf]
        %v320 = vld [vmem:[%s2 + $0x10] sm:$0xf]
        %v321 = vld [vmem:[%s2 + $0x14] sm:$0xf]
        %v322 = vld [vmem:[%s2 + $0x18] sm:$0xf]
        %v323 = vld [vmem:[%s2 + $0x1c] sm:$0xf]
        %v324 = vld [vmem:[%s3] sm:$0x1]
        %v326 = vlaneseq
        %v327 = vshrl.u32 %v326, 7
        %v328 = vsub.s32 0, %v327
        %v329 = vrot.slane %v324, %v328
        %v339 = vunpack.c.l.b16 %v316
        %v340 = vunpack.c.l.b16 %v317
        %v341 = vunpack.c.l.b16 %v318
        %v342 = vunpack.c.l.b16 %v319
        %v343 = vunpack.c.l.b16 %v320
        %v344 = vunpack.c.l.b16 %v321
        %v345 = vunpack.c.l.b16 %v322
        %v346 = vunpack.c.l.b16 %v323
        %v347 = vpack.c.b16 %v340, %v339
        %v348 = vpack.c.b16 %v342, %v341
        %v349 = vpack.c.b16 %v344, %v343
        %v350 = vpack.c.b16 %v346, %v345
        %vm355 = vcmask 523264
        %v357 = vsel %vm355, %v308, 0
        %v360 = vsel %vm355, %v309, 0
        %v363 = vsel %vm355, %v310, 0
        %v366 = vsel %vm355, %v311, 0
        %v369 = vsel %vm355, %v312, 0
        %v372 = vsel %vm355, %v313, 0
        %v375 = vsel %vm355, %v314, 0
        %v378 = vsel %vm355, %v315, 0
        %380 = vmatprep.subr.bf16.mxu0 0
        %381 = vmatpush1.bf16.msra.mxu0 %v347
        %382 = vmatprep.subr.bf16.mxu0 0
        %383 = vmatpush1.bf16.msra.mxu0 %v348
        %384 = vmatprep.subr.bf16.mxu0 0
        %385 = vmatpush1.bf16.msra.mxu0 %v349
        %386 = vmatprep.subr.bf16.mxu0 0
        %387 = vmatpush1.bf16.msra.mxu0 %v350
        %388 = vmatprep.subr.bf16.mxu0 0
        %389 = vmatpush1.bf16.msra.mxu0 0
        %390 = vmatprep.subr.bf16.mxu0 0
        %391 = vmatpush1.bf16.msra.mxu0 0
        %392 = vmatprep.subr.bf16.mxu0 0
        %393 = vmatpush1.bf16.msra.mxu0 0
        %394 = vmatprep.subr.bf16.mxu0 0
        %395 = vmatpush1.bf16.msra.mxu0 0
        %396 = vmatprep.subr.bf16.mxu0 0
        %397 = vmatpush1.bf16.msra.mxu0 0
        %398 = vmatprep.subr.bf16.mxu0 0
        %399 = vmatpush1.bf16.msra.mxu0 0
        %400 = vmatprep.subr.bf16.mxu0 0
        %401 = vmatpush1.bf16.msra.mxu0 0
        %402 = vmatprep.subr.bf16.mxu0 0
        %403 = vmatpush1.bf16.msra.mxu0 0
        %404 = vmatprep.subr.bf16.mxu0 0
        %405 = vmatpush1.bf16.msra.mxu0 0
        %406 = vmatprep.subr.bf16.mxu0 0
        %407 = vmatpush1.bf16.msra.mxu0 0
        %408 = vmatprep.subr.bf16.mxu0 0
        %409 = vmatpush1.bf16.msra.mxu0 0
        %410 = vmatprep.subr.bf16.mxu0 0
        %411 = vmatpush1.bf16.msra.mxu0 0
        %412 = vmatprep.mubr.bf16.mxu0 0
        %413 = vmatmul.mubr.bf16.gmra.mrb[0].mxu0 %v357
        %v414 = vpop.f32.mrb[0].mxu0
        %v415 = vadd.f32 %v329, %v414
        %v416 = vpop.f32.mrb[0].mxu0
        %v417 = vpop.f32.mrb[0].mxu0
        %v418 = vadd.f32 %v329, %v417
        %v419 = vpop.f32.mrb[0].mxu0
        %420 = vmatprep.mubr.bf16.mxu0 0
        %421 = vmatmul.mubr.bf16.gmra.mrb[0].mxu0 %v360
        %v422 = vpop.f32.mrb[0].mxu0
        %v423 = vadd.f32 %v329, %v422
        %v424 = vpop.f32.mrb[0].mxu0
        %v425 = vpop.f32.mrb[0].mxu0
        %v426 = vadd.f32 %v329, %v425
        %v427 = vpop.f32.mrb[0].mxu0
        %428 = vmatprep.mubr.bf16.mxu0 0
        %429 = vmatmul.mubr.bf16.gmra.mrb[0].mxu0 %v363
        %v430 = vpop.f32.mrb[0].mxu0
        %v431 = vadd.f32 %v329, %v430
        %v432 = vpop.f32.mrb[0].mxu0
        %v433 = vpop.f32.mrb[0].mxu0
        %v434 = vadd.f32 %v329, %v433
        %v435 = vpop.f32.mrb[0].mxu0
        %436 = vmatprep.mubr.bf16.mxu0 0
        %437 = vmatmul.mubr.bf16.gmra.mrb[0].mxu0 %v366
        %v438 = vpop.f32.mrb[0].mxu0
        %v439 = vadd.f32 %v329, %v438
        %v440 = vpop.f32.mrb[0].mxu0
        %v441 = vpop.f32.mrb[0].mxu0
        %v442 = vadd.f32 %v329, %v441
        %v443 = vpop.f32.mrb[0].mxu0
        %444 = vmatprep.mubr.bf16.mxu0 0
        %445 = vmatmul.mubr.bf16.gmra.mrb[0].mxu0 %v369
        %v446 = vpop.f32.mrb[0].mxu0
        %v447 = vadd.f32 %v329, %v446
        %v448 = vpop.f32.mrb[0].mxu0
        %v449 = vpop.f32.mrb[0].mxu0
        %v450 = vadd.f32 %v329, %v449
        %v451 = vpop.f32.mrb[0].mxu0
        %452 = vmatprep.mubr.bf16.mxu0 0
        %453 = vmatmul.mubr.bf16.gmra.mrb[0].mxu0 %v372
        %v454 = vpop.f32.mrb[0].mxu0
        %v455 = vadd.f32 %v329, %v454
        %v456 = vpop.f32.mrb[0].mxu0
        %v457 = vpop.f32.mrb[0].mxu0
        %v458 = vadd.f32 %v329, %v457
        %v459 = vpop.f32.mrb[0].mxu0
        %460 = vmatprep.mubr.bf16.mxu0 0
        %461 = vmatmul.mubr.bf16.gmra.mrb[0].mxu0 %v375
        %v462 = vpop.f32.mrb[0].mxu0
        %v463 = vadd.f32 %v329, %v462
        %v464 = vpop.f32.mrb[0].mxu0
        %v465 = vpop.f32.mrb[0].mxu0
        %v466 = vadd.f32 %v329, %v465
        %v467 = vpop.f32.mrb[0].mxu0
        %468 = vmatprep.mubr.bf16.mxu0 0
        %469 = vmatmul.mubr.bf16.gmra.mrb[0].mxu0 %v378
        %v470 = vpop.f32.mrb[0].mxu0
        %v471 = vadd.f32 %v329, %v470
        %v472 = vpop.f32.mrb[0].mxu0
        %v473 = vpop.f32.mrb[0].mxu0
        %v474 = vadd.f32 %v329, %v473
        %v475 = vpop.f32.mrb[0].mxu0
        %476 = vdwg.mxu0
        %478 = vset.pattern.permute.xlu0 0
        %479 = vperm.xlu0 %478, %v276
        %v480 = vpop.permute.xlu0 %479
        %483 = vset.pattern.permute.xlu0 0
        %484 = vperm.xlu0 %483, %v277
        %v485 = vpop.permute.xlu0 %484
        %488 = vset.pattern.permute.xlu0 0
        %489 = vperm.xlu0 %488, %v278
        %v490 = vpop.permute.xlu0 %489
        %493 = vset.pattern.permute.xlu0 0
        %494 = vperm.xlu0 %493, %v279
        %v495 = vpop.permute.xlu0 %494
        %498 = vset.pattern.permute.xlu0 0
        %499 = vperm.xlu0 %498, %v280
        %v500 = vpop.permute.xlu0 %499
        %503 = vset.pattern.permute.xlu0 0
        %504 = vperm.xlu0 %503, %v281
        %v505 = vpop.permute.xlu0 %504
        %508 = vset.pattern.permute.xlu0 0
        %509 = vperm.xlu0 %508, %v282
        %v510 = vpop.permute.xlu0 %509
        %513 = vset.pattern.permute.xlu0 0
        %514 = vperm.xlu0 %513, %v283
        %v515 = vpop.permute.xlu0 %514
        %518 = vset.pattern.permute.xlu0 0
        %519 = vperm.xlu0 %518, %v284
        %v520 = vpop.permute.xlu0 %519
        %523 = vset.pattern.permute.xlu0 0
        %524 = vperm.xlu0 %523, %v285
        %v525 = vpop.permute.xlu0 %524
        %528 = vset.pattern.permute.xlu0 0
        %529 = vperm.xlu0 %528, %v286
        %v530 = vpop.permute.xlu0 %529
        %533 = vset.pattern.permute.xlu0 0
        %534 = vperm.xlu0 %533, %v287
        %v535 = vpop.permute.xlu0 %534
        %538 = vset.pattern.permute.xlu0 0
        %539 = vperm.xlu0 %538, %v288
        %v540 = vpop.permute.xlu0 %539
        %543 = vset.pattern.permute.xlu0 0
        %544 = vperm.xlu0 %543, %v289
        %v545 = vpop.permute.xlu0 %544
        %548 = vset.pattern.permute.xlu0 0
        %549 = vperm.xlu0 %548, %v290
        %v550 = vpop.permute.xlu0 %549
        %553 = vset.pattern.permute.xlu0 0
        %554 = vperm.xlu0 %553, %v291
        %v555 = vpop.permute.xlu0 %554
        %v557 = vmul.f32 %v415, %v480
        %v558 = vmul.f32 %v418, %v485
        %v559 = vmul.f32 %v423, %v490
        %v560 = vmul.f32 %v426, %v495
        %v561 = vmul.f32 %v431, %v500
        %v562 = vmul.f32 %v434, %v505
        %v563 = vmul.f32 %v439, %v510
        %v564 = vmul.f32 %v442, %v515
        %v565 = vmul.f32 %v447, %v520
        %v566 = vmul.f32 %v450, %v525
        %v567 = vmul.f32 %v455, %v530
        %v568 = vmul.f32 %v458, %v535
        %v569 = vmul.f32 %v463, %v540
        %v570 = vmul.f32 %v466, %v545
        %v571 = vmul.f32 %v471, %v550
        %v572 = vmul.f32 %v474, %v555
        %v573 = vmax.f32 %v557, 0.0
        %v574 = vmax.f32 %v558, 0.0
        %v575 = vmax.f32 %v559, 0.0
        %v576 = vmax.f32 %v560, 0.0
        %v577 = vmax.f32 %v561, 0.0
        %v578 = vmax.f32 %v562, 0.0
        %v579 = vmax.f32 %v563, 0.0
        %v580 = vmax.f32 %v564, 0.0
        %v581 = vmax.f32 %v565, 0.0
        %v582 = vmax.f32 %v566, 0.0
        %v583 = vmax.f32 %v567, 0.0
        %v584 = vmax.f32 %v568, 0.0
        %v585 = vmax.f32 %v569, 0.0
        %v586 = vmax.f32 %v570, 0.0
        %v587 = vmax.f32 %v571, 0.0
        %v588 = vmax.f32 %v572, 0.0
        %v589 = vpack.c.bf16 %v574, %v573
        %v590 = vpack.c.bf16 %v576, %v575
        %v591 = vpack.c.bf16 %v578, %v577
        %v592 = vpack.c.bf16 %v580, %v579
        %v593 = vpack.c.bf16 %v582, %v581
        %v594 = vpack.c.bf16 %v584, %v583
        %v595 = vpack.c.bf16 %v586, %v585
        %v596 = vpack.c.bf16 %v588, %v587
        %v597 = vld [vmem:[%s4] sm:$0xf]
        %v598 = vld [vmem:[%s4 + $0x4] sm:$0xf]
        %v599 = vld [vmem:[%s4 + $0x8] sm:$0xf]
        %v600 = vld [vmem:[%s4 + $0xc] sm:$0xf]
        %v601 = vld [vmem:[%s4 + $0x10] sm:$0xf]
        %v602 = vld [vmem:[%s4 + $0x14] sm:$0xf]
        %v603 = vld [vmem:[%s4 + $0x18] sm:$0xf]
        %v604 = vld [vmem:[%s4 + $0x1c] sm:$0xf]
        %v605 = vld [vmem:[%s4 + $0x20] sm:$0xf]
        %v606 = vld [vmem:[%s4 + $0x24] sm:$0xf]
        %v607 = vld [vmem:[%s4 + $0x28] sm:$0xf]
        %v608 = vld [vmem:[%s4 + $0x2c] sm:$0xf]
        %v609 = vld [vmem:[%s4 + $0x30] sm:$0xf]
        %v610 = vld [vmem:[%s4 + $0x34] sm:$0xf]
        %v611 = vld [vmem:[%s4 + $0x38] sm:$0xf]
        %v612 = vld [vmem:[%s4 + $0x3c] sm:$0xf]
        %v613 = vld [vmem:[%s5] sm:$0x1]
        %v615 = vlaneseq
        %v616 = vshrl.u32 %v615, 7
        %v617 = vsub.s32 0, %v616
        %v618 = vrot.slane %v613, %v617
        %v636 = vunpack.c.l.b16 %v597
        %v637 = vunpack.c.l.b16 %v598
        %v638 = vunpack.c.l.b16 %v599
        %v639 = vunpack.c.l.b16 %v600
        %v640 = vunpack.c.l.b16 %v601
        %v641 = vunpack.c.l.b16 %v602
        %v642 = vunpack.c.l.b16 %v603
        %v643 = vunpack.c.l.b16 %v604
        %v644 = vunpack.c.l.b16 %v605
        %v645 = vunpack.c.l.b16 %v606
        %v646 = vunpack.c.l.b16 %v607
        %v647 = vunpack.c.l.b16 %v608
        %v648 = vunpack.c.l.b16 %v609
        %v649 = vunpack.c.l.b16 %v610
        %v650 = vunpack.c.l.b16 %v611
        %v651 = vunpack.c.l.b16 %v612
        %v652 = vpack.c.b16 %v637, %v636
        %v653 = vpack.c.b16 %v639, %v638
        %v654 = vpack.c.b16 %v641, %v640
        %v655 = vpack.c.b16 %v643, %v642
        %v656 = vpack.c.b16 %v645, %v644
        %v657 = vpack.c.b16 %v647, %v646
        %v658 = vpack.c.b16 %v649, %v648
        %v659 = vpack.c.b16 %v651, %v650
        %668 = vmatprep.subr.bf16.mxu0 0
        %669 = vmatpush1.bf16.msra.mxu0 %v652
        %670 = vmatprep.subr.bf16.mxu0 0
        %671 = vmatpush1.bf16.msra.mxu0 %v653
        %672 = vmatprep.subr.bf16.mxu0 0
        %673 = vmatpush1.bf16.msra.mxu0 %v654
        %674 = vmatprep.subr.bf16.mxu0 0
        %675 = vmatpush1.bf16.msra.mxu0 %v655
        %676 = vmatprep.subr.bf16.mxu0 0
        %677 = vmatpush1.bf16.msra.mxu0 %v656
        %678 = vmatprep.subr.bf16.mxu0 0
        %679 = vmatpush1.bf16.msra.mxu0 %v657
        %680 = vmatprep.subr.bf16.mxu0 0
        %681 = vmatpush1.bf16.msra.mxu0 %v658
        %682 = vmatprep.subr.bf16.mxu0 0
        %683 = vmatpush1.bf16.msra.mxu0 %v659
        %684 = vmatprep.subr.bf16.mxu0 0
        %685 = vmatpush1.bf16.msra.mxu0 0
        %686 = vmatprep.subr.bf16.mxu0 0
        %687 = vmatpush1.bf16.msra.mxu0 0
        %688 = vmatprep.subr.bf16.mxu0 0
        %689 = vmatpush1.bf16.msra.mxu0 0
        %690 = vmatprep.subr.bf16.mxu0 0
        %691 = vmatpush1.bf16.msra.mxu0 0
        %692 = vmatprep.subr.bf16.mxu0 0
        %693 = vmatpush1.bf16.msra.mxu0 0
        %694 = vmatprep.subr.bf16.mxu0 0
        %695 = vmatpush1.bf16.msra.mxu0 0
        %696 = vmatprep.subr.bf16.mxu0 0
        %697 = vmatpush1.bf16.msra.mxu0 0
        %698 = vmatprep.subr.bf16.mxu0 0
        %699 = vmatpush1.bf16.msra.mxu0 0
        %700 = vmatprep.mubr.bf16.mxu0 0
        %701 = vmatmul.mubr.bf16.gmra.mrb[0].mxu0 %v589
        %v702 = vpop.f32.mrb[0].mxu0
        %v703 = vadd.f32 %v618, %v702
        %v704 = vpop.f32.mrb[0].mxu0
        %v705 = vpop.f32.mrb[0].mxu0
        %v706 = vadd.f32 %v618, %v705
        %v707 = vpop.f32.mrb[0].mxu0
        %708 = vmatprep.mubr.bf16.mxu0 0
        %709 = vmatmul.mubr.bf16.gmra.mrb[0].mxu0 %v590
        %v710 = vpop.f32.mrb[0].mxu0
        %v711 = vadd.f32 %v618, %v710
        %v712 = vpop.f32.mrb[0].mxu0
        %v713 = vpop.f32.mrb[0].mxu0
        %v714 = vadd.f32 %v618, %v713
        %v715 = vpop.f32.mrb[0].mxu0
        %716 = vmatprep.mubr.bf16.mxu0 0
        %717 = vmatmul.mubr.bf16.gmra.mrb[0].mxu0 %v591
        %v718 = vpop.f32.mrb[0].mxu0
        %v719 = vadd.f32 %v618, %v718
        %v720 = vpop.f32.mrb[0].mxu0
        %v721 = vpop.f32.mrb[0].mxu0
        %v722 = vadd.f32 %v618, %v721
        %v723 = vpop.f32.mrb[0].mxu0
        %724 = vmatprep.mubr.bf16.mxu0 0
        %725 = vmatmul.mubr.bf16.gmra.mrb[0].mxu0 %v592
        %v726 = vpop.f32.mrb[0].mxu0
        %v727 = vadd.f32 %v618, %v726
        %v728 = vpop.f32.mrb[0].mxu0
        %v729 = vpop.f32.mrb[0].mxu0
        %v730 = vadd.f32 %v618, %v729
        %v731 = vpop.f32.mrb[0].mxu0
        %732 = vmatprep.mubr.bf16.mxu0 0
        %733 = vmatmul.mubr.bf16.gmra.mrb[0].mxu0 %v593
        %v734 = vpop.f32.mrb[0].mxu0
        %v735 = vadd.f32 %v618, %v734
        %v736 = vpop.f32.mrb[0].mxu0
        %v737 = vpop.f32.mrb[0].mxu0
        %v738 = vadd.f32 %v618, %v737
        %v739 = vpop.f32.mrb[0].mxu0
        %740 = vmatprep.mubr.bf16.mxu0 0
        %741 = vmatmul.mubr.bf16.gmra.mrb[0].mxu0 %v594
        %v742 = vpop.f32.mrb[0].mxu0
        %v743 = vadd.f32 %v618, %v742
        %v744 = vpop.f32.mrb[0].mxu0
        %v745 = vpop.f32.mrb[0].mxu0
        %v746 = vadd.f32 %v618, %v745
        %v747 = vpop.f32.mrb[0].mxu0
        %748 = vmatprep.mubr.bf16.mxu0 0
        %749 = vmatmul.mubr.bf16.gmra.mrb[0].mxu0 %v595
        %v750 = vpop.f32.mrb[0].mxu0
        %v751 = vadd.f32 %v618, %v750
        %v752 = vpop.f32.mrb[0].mxu0
        %v753 = vpop.f32.mrb[0].mxu0
        %v754 = vadd.f32 %v618, %v753
        %v755 = vpop.f32.mrb[0].mxu0
        %756 = vmatprep.mubr.bf16.mxu0 0
        %757 = vmatmul.mubr.bf16.gmra.mrb[0].mxu0 %v596
        %v758 = vpop.f32.mrb[0].mxu0
        %v759 = vadd.f32 %v618, %v758
        %v760 = vpop.f32.mrb[0].mxu0
        %v761 = vpop.f32.mrb[0].mxu0
        %v762 = vadd.f32 %v618, %v761
        %v763 = vpop.f32.mrb[0].mxu0
        %764 = vdwg.mxu0
        %v765 = vmul.f32 %v703, %v480
        %v766 = vmul.f32 %v706, %v485
        %v767 = vmul.f32 %v711, %v490
        %v768 = vmul.f32 %v714, %v495
        %v769 = vmul.f32 %v719, %v500
        %v770 = vmul.f32 %v722, %v505
        %v771 = vmul.f32 %v727, %v510
        %v772 = vmul.f32 %v730, %v515
        %v773 = vmul.f32 %v735, %v520
        %v774 = vmul.f32 %v738, %v525
        %v775 = vmul.f32 %v743, %v530
        %v776 = vmul.f32 %v746, %v535
        %v777 = vmul.f32 %v751, %v540
        %v778 = vmul.f32 %v754, %v545
        %v779 = vmul.f32 %v759, %v550
        %v780 = vmul.f32 %v762, %v555
        %v781 = vmax.f32 %v765, 0.0
        %v782 = vmax.f32 %v766, 0.0
        %v783 = vmax.f32 %v767, 0.0
        %v784 = vmax.f32 %v768, 0.0
        %v785 = vmax.f32 %v769, 0.0
        %v786 = vmax.f32 %v770, 0.0
        %v787 = vmax.f32 %v771, 0.0
        %v788 = vmax.f32 %v772, 0.0
        %v789 = vmax.f32 %v773, 0.0
        %v790 = vmax.f32 %v774, 0.0
        %v791 = vmax.f32 %v775, 0.0
        %v792 = vmax.f32 %v776, 0.0
        %v793 = vmax.f32 %v777, 0.0
        %v794 = vmax.f32 %v778, 0.0
        %v795 = vmax.f32 %v779, 0.0
        %v796 = vmax.f32 %v780, 0.0
        %797 = vst [vmem:[%s261] sm:$0xff] %v781
        %798 = vst [vmem:[%s261 + $0x8] sm:$0xff] %v782
        %799 = vst [vmem:[%s261 + $0x10] sm:$0xff] %v783
        %800 = vst [vmem:[%s261 + $0x18] sm:$0xff] %v784
        %801 = vst [vmem:[%s261 + $0x20] sm:$0xff] %v785
        %802 = vst [vmem:[%s261 + $0x28] sm:$0xff] %v786
        %803 = vst [vmem:[%s261 + $0x30] sm:$0xff] %v787
        %804 = vst [vmem:[%s261 + $0x38] sm:$0xff] %v788
        %805 = vst [vmem:[%s261 + $0x40] sm:$0xff] %v789
        %806 = vst [vmem:[%s261 + $0x48] sm:$0xff] %v790
        %807 = vst [vmem:[%s261 + $0x50] sm:$0xff] %v791
        %808 = vst [vmem:[%s261 + $0x58] sm:$0xff] %v792
        %809 = vst [vmem:[%s261 + $0x60] sm:$0xff] %v793
        %810 = vst [vmem:[%s261 + $0x68] sm:$0xff] %v794
        %811 = vst [vmem:[%s261 + $0x70] sm:$0xff] %v795
        %812 = vst [vmem:[%s261 + $0x78] sm:$0xff] %v796
        %s813 = sand.u32 %s164, 1
        %s814 = scalar_lea.sflag [#allocation3], %s813
        %s815 = sand.u32 %s164, 1
        %s816 = smul.addr %s815, 128
        %s817 = scalar_lea.vmem [#allocation2], %s816
        // Predicated region
        $region45: #{tpu_custom_call.1} parent=43 // pred_check
          %p818 = pneg %p174
        $region46: #{tpu_custom_call.1} parent=43 // pred_check_branch
          %820 = sbr.rel (%p818) target = $region48
        $region47: #{tpu_custom_call.1} parent=43 // pred_region
          %s821 = smul.u32 16, %s20
          %s823 = ssub.s32 2048, 2048
          %824 = vsyncadd %s814, %s823
          %s825 = smul.addr %s821, 128
          %s826 = scalar_lea.hbm %s6, %s825
          %s827 = sshll.u32 %s817, 4
          %s828 = int_to_ptr.vmem [resolvable:$true] %s827
          %833 = dma.vmem_to_hbm [thread:$0]  %s828, 2048, %s826, %s814, 128, 128, 8
        $region48: #{tpu_custom_call.1} parent=43 // pred_fallthru
          _
      $region44: #{tpu_custom_call.1} parent=5 // pred_fallthru
        _
      %p834 = scmp.le.s32.totalorder 2, %s15
      // Predicated region
      $region49: #{tpu_custom_call.1} parent=5 // pred_check
        %p835 = pneg %p834
      $region50: #{tpu_custom_call.1} parent=5 // pred_check_branch
        %837 = sbr.rel (%p835) target = $region52
      $region51: #{tpu_custom_call.1} parent=5 // pred_region
        %s838 = ssub.s32 %s15, 2
        // Predicated region
        $region53: #{tpu_custom_call.1} parent=51 // pred_check
          %p839 = pneg %p180
        $region54: #{tpu_custom_call.1} parent=51 // pred_check_branch
          %841 = sbr.rel (%p839) target = $region56
        $region55: #{tpu_custom_call.1} parent=51 // pred_region
          %s842 = sand.u32 %s165, 1
          %s843 = scalar_lea.sflag [#allocation3], %s842
          %s844 = sand.u32 %s165, 1
          %s845 = smul.addr %s844, 128
          %s846 = scalar_lea.vmem [#allocation2], %s845
          %847 = dma.done %s843, 2048
        $region56: #{tpu_custom_call.1} parent=51 // pred_fallthru
          _
      $region52: #{tpu_custom_call.1} parent=5 // pred_fallthru
        _
    $region6: #{tpu_custom_call.1} parent=1 // loop_footer
      %s19 = sadd.s32 1, %s15
    $region7: #{tpu_custom_call.1} parent=1 // loop_footer_branch
      %14 = sbr.rel target = $region3
    $region8: #{tpu_custom_call.1} parent=1 // loop_exit
      _
    %848 = vsyncpa [#allocation3], 1
    %s849 = scalar_lea.sflag [#allocation3], 1
    %850 = vsyncpa %s849, 1

</llo_original>
